<compile_context>
chip_gen: v5e
topology: v5e:2x2
jax: 0.10.0
libtpu: 0.0.40
codegen_flags: <defaults>
</compile_context>

<pallas_src>
import jax
import jax.numpy as jnp
from jax.experimental import pallas as pl
from jax.experimental.pallas import tpu as pltpu

# ----------------------------- config (small) --------------------------------
HIDDEN = 32          # transformer width (both towers)
NUM_HEADS = 2
HEAD_DIM = HIDDEN // NUM_HEADS
MLP_DIM = 64
NUM_LAYERS = 1
PROJ_DIM = 16        # shared embedding dim
PATCH = 8
IMG = 16
CHANNELS = 3
VOCAB = 64
SEQ = 8
BATCH = 2
LN_EPS = 1e-5
NUM_PATCHES = (IMG // PATCH) ** 2             # 4
N_TOK = NUM_PATCHES + 1                       # cls + patches = 5
VIS_SEQ = ((N_TOK + 7) // 8) * 8              # padded to 8 tokens
NEG_MASK = -1e30                              # finite -> NaN-free softmax
SLAB_W = 128                                  # packed small-param slab width

assert 3 * HIDDEN <= SLAB_W and MLP_DIM <= SLAB_W and HIDDEN <= SLAB_W
assert SEQ <= 8 and VIS_SEQ <= 8              # pos/ebias rows fit the slab layout


def _round_up(x, m):
    return ((x + m - 1) // m) * m


# slab row layout (per tower):
#   text:   rows [0:SEQ]          = pos_emb
#           rows [SEQ + 8l : +8]  = layer l small params
#           rows [SEQ + 8L, +1]   = final LN gamma / beta
#   vision: rows [0:VIS_SEQ]      = embedding bias (pos emb + cls emb, pad rows 0)
#           rows [VIS_SEQ, +1]    = pre-LN gamma / beta
#           rows [VIS_SEQ+2+8l:+8]= layer l small params
#           rows [VIS_SEQ+2+8L,+1]= post-LN gamma / beta
# per-layer 8-row block: 0 bqkv | 1 bo | 2 ln1_g | 3 ln1_b | 4 ln2_g | 5 ln2_b
#                        6 fc1_b | 7 fc2_b
T_SLAB_ROWS = _round_up(SEQ + 8 * NUM_LAYERS + 2, 8)
V_SLAB_ROWS = _round_up(VIS_SEQ + 2 + 8 * NUM_LAYERS + 2, 8)


# ----------------------------- in-kernel helpers ------------------------------
def _ln(x, g, b, eps=LN_EPS):
    m = jnp.mean(x, axis=-1, keepdims=True)
    v = jnp.mean((x - m) ** 2, axis=-1, keepdims=True)
    return (x - m) * jax.lax.rsqrt(v + eps) * g + b


def _softmax_last(x):
    x = x - jnp.max(x, axis=-1, keepdims=True)
    e = jnp.exp(x)
    return e * pl.reciprocal(jnp.sum(e, axis=-1, keepdims=True), approx=True)


def _quick_gelu(x):  # CLIP default activation
    return x * (1.0 / (1.0 + jnp.exp(-1.702 * x)))


def _encoder_layer(h2, mask_add, B, S, wqkv, wo, fc1_w, fc2_w, slab, base):
    """One CLIP encoder layer on flattened activations h2: [B*S, D].

    mask_add: [B, S, S] additive attention mask.
    wqkv/wo/fc1_w/fc2_w are already-loaded weight arrays; slab is the packed
    small-param Ref, base the first row of this layer's 8-row block.
    """
    D = h2.shape[-1]
    hd = D // NUM_HEADS
    scale = hd ** -0.5

    ln1_g = slab[base + 2:base + 3, 0:D]
    ln1_b = slab[base + 3:base + 4, 0:D]
    x2 = _ln(h2, ln1_g, ln1_b)

    # fused QKV projection: a single [B*S, D] @ [D, 3D] matmul
    bqkv = slab[base + 0:base + 1, 0:3 * D]
    qkv2 = jnp.dot(x2, wqkv, preferred_element_type=jnp.float32) + bqkv

    # head-batched attention with ONE flattened batch dim (head-major, n = h*B+b)
    def split(block):
        return [qkv2[:, block * D + h * hd: block * D + (h + 1) * hd].reshape(B, S, hd)
                for h in range(NUM_HEADS)]

    q_n = jnp.concatenate(split(0), axis=0) * scale        # [H*B, S, hd]
    k_n = jnp.concatenate(split(1), axis=0)
    v_n = jnp.concatenate(split(2), axis=0)
    mask_n = jnp.concatenate([mask_add] * NUM_HEADS, axis=0)

    sc = jnp.einsum('nqd,nkd->nqk', q_n, k_n,
                    preferred_element_type=jnp.float32) + mask_n
    p = _softmax_last(sc)
    ctx_n = jnp.einsum('nqk,nkd->nqd', p, v_n,
                       preferred_element_type=jnp.float32)  # [H*B, S, hd]

    # concat heads along features -> ONE output projection
    ctx2 = jnp.concatenate(
        [ctx_n[h * B:(h + 1) * B].reshape(B * S, hd) for h in range(NUM_HEADS)],
        axis=-1)                                            # [B*S, D]
    bo = slab[base + 1:base + 2, 0:D]
    h2 = h2 + jnp.dot(ctx2, wo, preferred_element_type=jnp.float32) + bo

    ln2_g = slab[base + 4:base + 5, 0:D]
    ln2_b = slab[base + 5:base + 6, 0:D]
    y2 = _ln(h2, ln2_g, ln2_b)
    fc1_b = slab[base + 6:base + 7, 0:fc1_w.shape[-1]]
    fc2_b = slab[base + 7:base + 8, 0:D]
    y2 = _quick_gelu(jnp.dot(y2, fc1_w, preferred_element_type=jnp.float32) + fc1_b)
    y2 = jnp.dot(y2, fc2_w, preferred_element_type=jnp.float32) + fc2_b
    return h2 + y2


# ----------------------------- fused Pallas kernel ----------------------------
def _clip_fused_kernel(inv_temp_ref,                    # SMEM (1,1)
                       tok_ref, amask_ref, eos_ref, visx_ref,
                       t_wqkv_ref, t_wo_ref, t_fc1_ref, t_fc2_ref, t_slab_ref, t_proj_ref,
                       v_pw_ref, v_wqkv_ref, v_wo_ref, v_fc1_ref, v_fc2_ref, v_slab_ref, v_proj_ref,
                       i2t_ref, t2i_ref):
    B, S = amask_ref.shape
    D = HIDDEN
    Sv = VIS_SEQ

    # ----------------------------- text tower --------------------------------
    pos = t_slab_ref[0:S, 0:D]                                          # [S, D]
    h_t = (tok_ref[...].reshape(B, S, D) + pos[None, :, :]).reshape(B * S, D)

    # causal + key-padding additive mask, built in-kernel from [B,S] mask
    rows = jax.lax.broadcasted_iota(jnp.int32, (S, S), 0)
    cols = jax.lax.broadcasted_iota(jnp.int32, (S, S), 1)
    causal_ok = rows >= cols                                            # [S, S]
    key_ok = amask_ref[...] > 0.0                                       # [B, S]
    allowed = jnp.logical_and(causal_ok[None, :, :], key_ok[:, None, :])
    mask_t = jnp.where(allowed, 0.0, NEG_MASK)                          # [B, S, S]

    for l in range(NUM_LAYERS):
        h_t = _encoder_layer(h_t, mask_t, B, S,
                             t_wqkv_ref[l], t_wo_ref[l], t_fc1_ref[l], t_fc2_ref[l],
                             t_slab_ref, S + 8 * l)

    # EOS pooling (final per-token LN commutes with token selection, so it is
    # applied after pooling -- exactly equivalent, less work).
    pooled_t = jnp.sum(h_t.reshape(B, S, D) * eos_ref[...], axis=1)     # [B, D]
    fin = S + 8 * NUM_LAYERS
    pooled_t = _ln(pooled_t,
                   t_slab_ref[fin:fin + 1, 0:D], t_slab_ref[fin + 1:fin + 2, 0:D])
    temb = jnp.dot(pooled_t, t_proj_ref[...], preferred_element_type=jnp.float32)

    # ---------------------------- vision tower -------------------------------
    h_v = jnp.dot(visx_ref[...], v_pw_ref[...],
                  preferred_element_type=jnp.float32)                   # [B*Sv, D]
    ebias = v_slab_ref[0:Sv, 0:D]                                       # cls/pos bias
    h_v = (h_v.reshape(B, Sv, D) + ebias[None, :, :]).reshape(B * Sv, D)
    h_v = _ln(h_v, v_slab_ref[Sv:Sv + 1, 0:D], v_slab_ref[Sv + 1:Sv + 2, 0:D])

    # compile-time constant key-padding mask (padded tokens never attend as keys)
    kcols = jax.lax.broadcasted_iota(jnp.int32, (Sv, Sv), 1)
    mask_v = jnp.where(kcols < N_TOK, 0.0, NEG_MASK)                    # [Sv, Sv]
    mask_v = jnp.broadcast_to(mask_v[None, :, :], (B, Sv, Sv))

    for l in range(NUM_LAYERS):
        h_v = _encoder_layer(h_v, mask_v, B, Sv,
                             v_wqkv_ref[l], v_wo_ref[l], v_fc1_ref[l], v_fc2_ref[l],
                             v_slab_ref, Sv + 2 + 8 * l)

    pooled_v = h_v.reshape(B, Sv, D)[:, 0:1, :].reshape(B, D)           # CLS token
    vfin = Sv + 2 + 8 * NUM_LAYERS
    pooled_v = _ln(pooled_v,
                   v_slab_ref[vfin:vfin + 1, 0:D], v_slab_ref[vfin + 1:vfin + 2, 0:D])
    vemb = jnp.dot(pooled_v, v_proj_ref[...], preferred_element_type=jnp.float32)

    # ------------------------- normalize + similarity ------------------------
    inv_t = inv_temp_ref[0, 0]
    # F.normalize(p=2, dim=-1, eps=1e-12) == x * rsqrt(max(sum(x^2), eps^2))
    tn = temb * jax.lax.rsqrt(
        jnp.maximum(jnp.sum(temb * temb, axis=-1, keepdims=True), 1e-24))
    vn = vemb * jax.lax.rsqrt(
        jnp.maximum(jnp.sum(vemb * vemb, axis=-1, keepdims=True), 1e-24))
    t2i_ref[...] = jnp.einsum('td,id->ti', tn, vn,
                              preferred_element_type=jnp.float32) * inv_t
    i2t_ref[...] = jnp.einsum('id,td->it', vn, tn,
                              preferred_element_type=jnp.float32) * inv_t


# ----------------------------- one-time param prep ----------------------------
def prepare_params(params):
    """Hoists ALL static parameter preprocessing out of the per-forward jit."""
    D = HIDDEN
    L = NUM_LAYERS

    def layer_block(p):
        blk = jnp.zeros((8, SLAB_W), jnp.float32)
        blk = blk.at[0, :3 * D].set(jnp.concatenate([p['bq'], p['bk'], p['bv']]))
        blk = blk.at[1, :D].set(p['bo'])
        blk = blk.at[2, :D].set(p['ln1_g'])
        blk = blk.at[3, :D].set(p['ln1_b'])
        blk = blk.at[4, :D].set(p['ln2_g'])
        blk = blk.at[5, :D].set(p['ln2_b'])
        blk = blk.at[6, :MLP_DIM].set(p['fc1_b'])
        blk = blk.at[7, :D].set(p['fc2_b'])
        return blk

    def stack_weights(layers):
        wqkv = jnp.stack([jnp.concatenate([p['wq'], p['wk'], p['wv']], axis=1)
                          for p in layers])                    # [L, D, 3D]
        wo = jnp.stack([p['wo'] for p in layers])              # [L, D, D]
        fc1 = jnp.stack([p['fc1_w'] for p in layers])          # [L, D, MLP]
        fc2 = jnp.stack([p['fc2_w'] for p in layers])          # [L, MLP, D]
        return wqkv, wo, fc1, fc2

    tp, vp = params['text'], params['vision']

    # text small-param slab
    t_slab = jnp.zeros((T_SLAB_ROWS, SLAB_W), jnp.float32)
    t_slab = t_slab.at[0:SEQ, :D].set(tp['pos_emb'])
    for l, p in enumerate(tp['layers']):
        t_slab = t_slab.at[SEQ + 8 * l: SEQ + 8 * (l + 1), :].set(layer_block(p))
    fin = SEQ + 8 * L
    t_slab = t_slab.at[fin, :D].set(tp['final_ln_g'])
    t_slab = t_slab.at[fin + 1, :D].set(tp['final_ln_b'])

    # vision small-param slab (embedding bias = pos emb + class emb, pad rows 0)
    ebias = jnp.zeros((VIS_SEQ, D), jnp.float32)
    ebias = ebias.at[:N_TOK].set(vp['pos_emb'])
    ebias = ebias.at[0].add(vp['class_emb'])
    v_slab = jnp.zeros((V_SLAB_ROWS, SLAB_W), jnp.float32)
    v_slab = v_slab.at[0:VIS_SEQ, :D].set(ebias)
    v_slab = v_slab.at[VIS_SEQ, :D].set(vp['pre_ln_g'])
    v_slab = v_slab.at[VIS_SEQ + 1, :D].set(vp['pre_ln_b'])
    for l, p in enumerate(vp['layers']):
        base = VIS_SEQ + 2 + 8 * l
        v_slab = v_slab.at[base:base + 8, :].set(layer_block(p))
    vfin = VIS_SEQ + 2 + 8 * L
    v_slab = v_slab.at[vfin, :D].set(vp['post_ln_g'])
    v_slab = v_slab.at[vfin + 1, :D].set(vp['post_ln_b'])

    t_wqkv, t_wo, t_fc1, t_fc2 = stack_weights(tp['layers'])
    v_wqkv, v_wo, v_fc1, v_fc2 = stack_weights(vp['layers'])

    return {
        'tok_emb': tp['tok_emb'],
        'inv_temp': (1.0 / params['temp']).astype(jnp.float32).reshape(1, 1),
        't_wqkv': t_wqkv, 't_wo': t_wo, 't_fc1': t_fc1, 't_fc2': t_fc2,
        't_slab': t_slab, 't_proj': params['text_proj'],
        'v_patch_w': vp['patch_w'],
        'v_wqkv': v_wqkv, 'v_wo': v_wo, 'v_fc1': v_fc1, 'v_fc2': v_fc2,
        'v_slab': v_slab, 'v_proj': params['visual_proj'],
    }


# ----------------------------- jitted forward ---------------------------------
@jax.jit
def custom_clip_forward(prepped, input_ids, pixel_values, attention_mask):
    """Mirrors custom_clip.forward -> (image2text_scores, text2image_scores)."""
    B, S = input_ids.shape
    D = HIDDEN

    # input-dependent prep only (everything static was hoisted to prepare_params)
    tok = prepped['tok_emb'][input_ids].reshape(B * S, D)
    amask = attention_mask.astype(jnp.float32)
    # TODO(synk): EOS pooling mirrors HF CLIP (argmax of token ids); synthetic
    # ids carry no real EOS token, so the pooled position is smoke-test only.
    eos_oh = jax.nn.one_hot(jnp.argmax(input_ids, axis=-1), S,
                            dtype=jnp.float32)[:, :, None]              # [B,S,1]

    # patchify: stride==kernel conv rewritten as flattened-patch matmul (in-kernel)
    _, C, Himg, Wimg = pixel_values.shape
    p = PATCH
    gh, gw = Himg // p, Wimg // p
    x = pixel_values.reshape(B, C, gh, p, gw, p)
    x = x.transpose(0, 2, 4, 1, 3, 5).reshape(B, gh * gw, C * p * p)
    # token 0 (cls slot) and padded tokens get zero rows
    x = jnp.pad(x, ((0, 0), (1, VIS_SEQ - (gh * gw + 1)), (0, 0)))
    visx = x.reshape(B * VIS_SEQ, C * p * p)

    vmem = pl.BlockSpec(memory_space=pltpu.MemorySpace.VMEM)
    smem = pl.BlockSpec(memory_space=pltpu.MemorySpace.SMEM)

    i2t, t2i = pl.pallas_call(
        _clip_fused_kernel,
        out_shape=(jax.ShapeDtypeStruct((B, B), jnp.float32),
                   jax.ShapeDtypeStruct((B, B), jnp.float32)),
        in_specs=[smem] + [vmem] * 17,
        out_specs=(vmem, vmem),
    )(prepped['inv_temp'], tok, amask, eos_oh, visx,
      prepped['t_wqkv'], prepped['t_wo'], prepped['t_fc1'], prepped['t_fc2'],
      prepped['t_slab'], prepped['t_proj'],
      prepped['v_patch_w'], prepped['v_wqkv'], prepped['v_wo'], prepped['v_fc1'],
      prepped['v_fc2'], prepped['v_slab'], prepped['v_proj'])
    return i2t, t2i


# ----------------------------- param init ------------------------------------
def _linear_params(key, din, dout, scale=0.02):
    return (jax.random.normal(key, (din, dout), jnp.float32) * scale,
            jnp.zeros((dout,), jnp.float32))


def _layer_params(key, dim, mlp):
    ks = jax.random.split(key, 6)
    p = {}
    p['wq'], p['bq'] = _linear_params(ks[0], dim, dim)
    p['wk'], p['bk'] = _linear_params(ks[1], dim, dim)
    p['wv'], p['bv'] = _linear_params(ks[2], dim, dim)
    p['wo'], p['bo'] = _linear_params(ks[3], dim, dim)
    p['fc1_w'], p['fc1_b'] = _linear_params(ks[4], dim, mlp)
    p['fc2_w'], p['fc2_b'] = _linear_params(ks[5], mlp, dim)
    p['ln1_g'] = jnp.ones((dim,), jnp.float32)
    p['ln1_b'] = jnp.zeros((dim,), jnp.float32)
    p['ln2_g'] = jnp.ones((dim,), jnp.float32)
    p['ln2_b'] = jnp.zeros((dim,), jnp.float32)
    return p


def init_params(key, temp=0.07):
    keys = jax.random.split(key, 12)
    vision = {
        'patch_w': jax.random.normal(keys[0], (CHANNELS * PATCH * PATCH, HIDDEN),
                                     jnp.float32) * 0.02,
        'class_emb': jax.random.normal(keys[1], (HIDDEN,), jnp.float32) * 0.02,
        'pos_emb': jax.random.normal(keys[2], (N_TOK, HIDDEN), jnp.float32) * 0.02,
        'pre_ln_g': jnp.ones((HIDDEN,), jnp.float32),
        'pre_ln_b': jnp.zeros((HIDDEN,), jnp.float32),
        'post_ln_g': jnp.ones((HIDDEN,), jnp.float32),
        'post_ln_b': jnp.zeros((HIDDEN,), jnp.float32),
        'layers': [_layer_params(k, HIDDEN, MLP_DIM)
                   for k in jax.random.split(keys[3], NUM_LAYERS)],
    }
    text = {
        'tok_emb': jax.random.normal(keys[4], (VOCAB, HIDDEN), jnp.float32) * 0.02,
        'pos_emb': jax.random.normal(keys[5], (SEQ, HIDDEN), jnp.float32) * 0.02,
        'final_ln_g': jnp.ones((HIDDEN,), jnp.float32),
        'final_ln_b': jnp.zeros((HIDDEN,), jnp.float32),
        'layers': [_layer_params(k, HIDDEN, MLP_DIM)
                   for k in jax.random.split(keys[6], NUM_LAYERS)],
    }
    return {
        'vision': vision,
        'text': text,
        'visual_proj': jax.random.normal(keys[7], (HIDDEN, PROJ_DIM),
                                         jnp.float32) * 0.02,
        'text_proj': jax.random.normal(keys[8], (HIDDEN, PROJ_DIM),
                                       jnp.float32) * 0.02,
        'temp': jnp.array([temp], jnp.float32),   # nn.Parameter(torch.Tensor([temp]))
    }


# ----------------------------- main -------------------------------------------
if __name__ == "__main__":
    key = jax.random.PRNGKey(0)
    k_params, k_ids, k_pix = jax.random.split(key, 3)

    params = init_params(k_params, temp=0.07)
    prepped = prepare_params(params)          # one-time, outside the jitted forward

    input_ids = jax.random.randint(k_ids, (BATCH, SEQ), 1, VOCAB, dtype=jnp.int32)
    pixel_values = jax.random.normal(k_pix, (BATCH, CHANNELS, IMG, IMG),
                                     jnp.float32)
    attention_mask = jnp.ones((BATCH, SEQ), jnp.int32)

    image2text_scores, text2image_scores = custom_clip_forward(
        prepped, input_ids, pixel_values, attention_mask)
    jax.block_until_ready((image2text_scores, text2image_scores))

    assert image2text_scores.shape == (BATCH, BATCH)
    assert text2image_scores.shape == (BATCH, BATCH)
    assert bool(jnp.all(jnp.isfinite(image2text_scores)))
    assert bool(jnp.all(jnp.isfinite(text2image_scores)))
    assert bool(jnp.allclose(image2text_scores, text2image_scores.T,
                             rtol=1e-5, atol=1e-6))
    print("KERNEL_OK")
</pallas_src>

<mosaic_0001>
module attributes {stable_mosaic.version = 11 : i64} {
  func.func @_clip_fused_kernel(%arg0: memref<1x1xf32, #tpu.memory_space<smem>>, %arg1: memref<16x32xf32, #tpu.memory_space<vmem>>, %arg2: memref<2x8xf32, #tpu.memory_space<vmem>>, %arg3: memref<2x8x1xf32, #tpu.memory_space<vmem>>, %arg4: memref<16x192xf32, #tpu.memory_space<vmem>>, %arg5: memref<1x32x96xf32, #tpu.memory_space<vmem>>, %arg6: memref<1x32x32xf32, #tpu.memory_space<vmem>>, %arg7: memref<1x32x64xf32, #tpu.memory_space<vmem>>, %arg8: memref<1x64x32xf32, #tpu.memory_space<vmem>>, %arg9: memref<24x128xf32, #tpu.memory_space<vmem>>, %arg10: memref<32x16xf32, #tpu.memory_space<vmem>>, %arg11: memref<192x32xf32, #tpu.memory_space<vmem>>, %arg12: memref<1x32x96xf32, #tpu.memory_space<vmem>>, %arg13: memref<1x32x32xf32, #tpu.memory_space<vmem>>, %arg14: memref<1x32x64xf32, #tpu.memory_space<vmem>>, %arg15: memref<1x64x32xf32, #tpu.memory_space<vmem>>, %arg16: memref<24x128xf32, #tpu.memory_space<vmem>>, %arg17: memref<32x16xf32, #tpu.memory_space<vmem>>, %arg18: memref<2x2xf32, #tpu.memory_space<vmem>>, %arg19: memref<2x2xf32, #tpu.memory_space<vmem>>) attributes {dimension_semantics = [], scalar_prefetch = 0 : i64, scratch_operands = 0 : i64, tpu.core_type = #tpu.core_type<tc>} {
    %c0 = arith.constant 0 : index
    %c0_0 = arith.constant 0 : index
    %0 = vector.load %arg9[%c0, %c0_0] : memref<24x128xf32, #tpu.memory_space<vmem>>, vector<8x32xf32>
    %c0_1 = arith.constant 0 : index
    %c0_2 = arith.constant 0 : index
    %1 = vector.load %arg1[%c0_1, %c0_2] : memref<16x32xf32, #tpu.memory_space<vmem>>, vector<16x32xf32>
    %2 = vector.shape_cast %1 : vector<16x32xf32> to vector<2x8x32xf32>
    %3 = vector.shape_cast %0 : vector<8x32xf32> to vector<1x8x32xf32>
    %4 = vector.broadcast %3 : vector<1x8x32xf32> to vector<2x8x32xf32>
    %5 = arith.addf %2, %4 : vector<2x8x32xf32>
    %6 = vector.shape_cast %5 : vector<2x8x32xf32> to vector<16x32xf32>
    %7 = tpu.iota {dimensions = array<i32: 0>} : vector<8x8xi32>
    %8 = tpu.iota {dimensions = array<i32: 1>} : vector<8x8xi32>
    %9 = arith.cmpi sge, %7, %8 : vector<8x8xi32>
    %c0_3 = arith.constant 0 : index
    %c0_4 = arith.constant 0 : index
    %10 = vector.load %arg2[%c0_3, %c0_4] : memref<2x8xf32, #tpu.memory_space<vmem>>, vector<2x8xf32>
    %cst = arith.constant 0.000000e+00 : f32
    %11 = vector.broadcast %cst : f32 to vector<2x8xf32>
    %12 = arith.cmpf ogt, %10, %11 : vector<2x8xf32>
    %13 = vector.shape_cast %9 : vector<8x8xi1> to vector<1x8x8xi1>
    %14 = vector.shape_cast %12 : vector<2x8xi1> to vector<2x1x8xi1>
    %15 = vector.broadcast %13 : vector<1x8x8xi1> to vector<2x8x8xi1>
    %16 = vector.broadcast %14 : vector<2x1x8xi1> to vector<2x8x8xi1>
    %17 = arith.andi %15, %16 : vector<2x8x8xi1>
    %cst_5 = arith.constant 0.000000e+00 : f32
    %cst_6 = arith.constant -1.000000e+30 : f32
    %18 = vector.broadcast %cst_5 : f32 to vector<2x8x8xf32>
    %19 = vector.broadcast %cst_6 : f32 to vector<2x8x8xf32>
    %20 = arith.select %17, %18, %19 : vector<2x8x8xi1>, vector<2x8x8xf32>
    %c0_7 = arith.constant 0 : index
    %c0_8 = arith.constant 0 : index
    %c0_9 = arith.constant 0 : index
    %21 = vector.load %arg5[%c0_7, %c0_8, %c0_9] : memref<1x32x96xf32, #tpu.memory_space<vmem>>, vector<1x32x96xf32>
    %22 = vector.shape_cast %21 : vector<1x32x96xf32> to vector<32x96xf32>
    %c0_10 = arith.constant 0 : index
    %c0_11 = arith.constant 0 : index
    %c0_12 = arith.constant 0 : index
    %23 = vector.load %arg6[%c0_10, %c0_11, %c0_12] : memref<1x32x32xf32, #tpu.memory_space<vmem>>, vector<1x32x32xf32>
    %24 = vector.shape_cast %23 : vector<1x32x32xf32> to vector<32x32xf32>
    %c0_13 = arith.constant 0 : index
    %c0_14 = arith.constant 0 : index
    %c0_15 = arith.constant 0 : index
    %25 = vector.load %arg7[%c0_13, %c0_14, %c0_15] : memref<1x32x64xf32, #tpu.memory_space<vmem>>, vector<1x32x64xf32>
    %26 = vector.shape_cast %25 : vector<1x32x64xf32> to vector<32x64xf32>
    %c0_16 = arith.constant 0 : index
    %c0_17 = arith.constant 0 : index
    %c0_18 = arith.constant 0 : index
    %27 = vector.load %arg8[%c0_16, %c0_17, %c0_18] : memref<1x64x32xf32, #tpu.memory_space<vmem>>, vector<1x64x32xf32>
    %28 = vector.shape_cast %27 : vector<1x64x32xf32> to vector<64x32xf32>
    %c10 = arith.constant 10 : index
    %c0_19 = arith.constant 0 : index
    %29 = vector.load %arg9[%c10, %c0_19] : memref<24x128xf32, #tpu.memory_space<vmem>>, vector<1x32xf32>
    %c11 = arith.constant 11 : index
    %c0_20 = arith.constant 0 : index
    %30 = vector.load %arg9[%c11, %c0_20] : memref<24x128xf32, #tpu.memory_space<vmem>>, vector<1x32xf32>
    %cst_21 = arith.constant dense<0.000000e+00> : vector<16xf32>
    %31 = vector.multi_reduction <add>, %6, %cst_21 [1] : vector<16x32xf32> to vector<16xf32>
    %32 = vector.shape_cast %31 : vector<16xf32> to vector<16x1xf32>
    %cst_22 = arith.constant 3.200000e+01 : f32
    %33 = vector.broadcast %cst_22 : f32 to vector<16x1xf32>
    %34 = arith.divf %32, %33 : vector<16x1xf32>
    %35 = vector.broadcast %34 : vector<16x1xf32> to vector<16x32xf32>
    %36 = arith.subf %6, %35 : vector<16x32xf32>
    %37 = arith.mulf %36, %36 : vector<16x32xf32>
    %cst_23 = arith.constant dense<0.000000e+00> : vector<16xf32>
    %38 = vector.multi_reduction <add>, %37, %cst_23 [1] : vector<16x32xf32> to vector<16xf32>
    %39 = vector.shape_cast %38 : vector<16xf32> to vector<16x1xf32>
    %cst_24 = arith.constant 3.200000e+01 : f32
    %40 = vector.broadcast %cst_24 : f32 to vector<16x1xf32>
    %41 = arith.divf %39, %40 : vector<16x1xf32>
    %42 = vector.broadcast %34 : vector<16x1xf32> to vector<16x32xf32>
    %43 = arith.subf %6, %42 : vector<16x32xf32>
    %cst_25 = arith.constant 9.99999974E-6 : f32
    %44 = vector.broadcast %cst_25 : f32 to vector<16x1xf32>
    %45 = arith.addf %41, %44 : vector<16x1xf32>
    %46 = math.rsqrt %45 : vector<16x1xf32>
    %47 = vector.broadcast %46 : vector<16x1xf32> to vector<16x32xf32>
    %48 = arith.mulf %43, %47 : vector<16x32xf32>
    %49 = vector.broadcast %29 : vector<1x32xf32> to vector<16x32xf32>
    %50 = arith.mulf %48, %49 : vector<16x32xf32>
    %51 = vector.broadcast %30 : vector<1x32xf32> to vector<16x32xf32>
    %52 = arith.addf %50, %51 : vector<16x32xf32>
    %c8 = arith.constant 8 : index
    %c0_26 = arith.constant 0 : index
    %53 = vector.load %arg9[%c8, %c0_26] : memref<24x128xf32, #tpu.memory_space<vmem>>, vector<1x96xf32>
    %cst_27 = arith.constant dense<0.000000e+00> : vector<16x96xf32>
    %54 = tpu.matmul %52, %22, %cst_27 {dimension_numbers = #tpu.dot_dimension_numbers<[1], [0], [0], [1], [0, 0, 1, 1], [], []>} : vector<16x32xf32>, vector<32x96xf32>, vector<16x96xf32> -> vector<16x96xf32>
    %55 = vector.broadcast %53 : vector<1x96xf32> to vector<16x96xf32>
    %56 = arith.addf %54, %55 : vector<16x96xf32>
    %57 = vector.extract_strided_slice %56 {offsets = [0, 0], sizes = [16, 16], strides = [1, 1]} : vector<16x96xf32> to vector<16x16xf32>
    %58 = vector.shape_cast %57 : vector<16x16xf32> to vector<2x8x16xf32>
    %59 = vector.extract_strided_slice %56 {offsets = [0, 16], sizes = [16, 16], strides = [1, 1]} : vector<16x96xf32> to vector<16x16xf32>
    %60 = vector.shape_cast %59 : vector<16x16xf32> to vector<2x8x16xf32>
    %61 = tpu.concatenate %58, %60 in 0 : vector<2x8x16xf32>, vector<2x8x16xf32> -> vector<4x8x16xf32>
    %cst_28 = arith.constant 2.500000e-01 : f32
    %62 = vector.broadcast %cst_28 : f32 to vector<4x8x16xf32>
    %63 = arith.mulf %61, %62 : vector<4x8x16xf32>
    %64 = vector.extract_strided_slice %56 {offsets = [0, 32], sizes = [16, 16], strides = [1, 1]} : vector<16x96xf32> to vector<16x16xf32>
    %65 = vector.shape_cast %64 : vector<16x16xf32> to vector<2x8x16xf32>
    %66 = vector.extract_strided_slice %56 {offsets = [0, 48], sizes = [16, 16], strides = [1, 1]} : vector<16x96xf32> to vector<16x16xf32>
    %67 = vector.shape_cast %66 : vector<16x16xf32> to vector<2x8x16xf32>
    %68 = tpu.concatenate %65, %67 in 0 : vector<2x8x16xf32>, vector<2x8x16xf32> -> vector<4x8x16xf32>
    %69 = vector.extract_strided_slice %56 {offsets = [0, 64], sizes = [16, 16], strides = [1, 1]} : vector<16x96xf32> to vector<16x16xf32>
    %70 = vector.shape_cast %69 : vector<16x16xf32> to vector<2x8x16xf32>
    %71 = vector.extract_strided_slice %56 {offsets = [0, 80], sizes = [16, 16], strides = [1, 1]} : vector<16x96xf32> to vector<16x16xf32>
    %72 = vector.shape_cast %71 : vector<16x16xf32> to vector<2x8x16xf32>
    %73 = tpu.concatenate %70, %72 in 0 : vector<2x8x16xf32>, vector<2x8x16xf32> -> vector<4x8x16xf32>
    %74 = tpu.concatenate %20, %20 in 0 : vector<2x8x8xf32>, vector<2x8x8xf32> -> vector<4x8x8xf32>
    "tpu.trace_start"() <{level = 10 : i32, message = "nqd,nkd->nqk"}> : () -> ()
    %cst_29 = arith.constant dense<0.000000e+00> : vector<4x8x8xf32>
    %75 = tpu.matmul %63, %68, %cst_29 {dimension_numbers = #tpu.dot_dimension_numbers<[2], [2], [1], [1], [0, 0, 0, 1, 1, 1], [0], [0]>} : vector<4x8x16xf32>, vector<4x8x16xf32>, vector<4x8x8xf32> -> vector<4x8x8xf32>
    "tpu.trace_stop"() : () -> ()
    %76 = arith.addf %75, %74 : vector<4x8x8xf32>
    %cst_30 = arith.constant dense<0xFF800000> : vector<4x8xf32>
    %77 = vector.multi_reduction <maximumf>, %76, %cst_30 [2] : vector<4x8x8xf32> to vector<4x8xf32>
    %78 = vector.shape_cast %77 : vector<4x8xf32> to vector<4x8x1xf32>
    %79 = vector.broadcast %78 : vector<4x8x1xf32> to vector<4x8x8xf32>
    %80 = arith.subf %76, %79 : vector<4x8x8xf32>
    %81 = math.exp %80 : vector<4x8x8xf32>
    %cst_31 = arith.constant dense<0.000000e+00> : vector<4x8xf32>
    %82 = vector.multi_reduction <add>, %81, %cst_31 [2] : vector<4x8x8xf32> to vector<4x8xf32>
    %83 = vector.shape_cast %82 : vector<4x8xf32> to vector<4x8x1xf32>
    %84 = tpu.reciprocal %83 {approx = true} : vector<4x8x1xf32> -> vector<4x8x1xf32>
    %85 = vector.broadcast %84 : vector<4x8x1xf32> to vector<4x8x8xf32>
    %86 = arith.mulf %81, %85 : vector<4x8x8xf32>
    "tpu.trace_start"() <{level = 10 : i32, message = "nqk,nkd->nqd"}> : () -> ()
    %cst_32 = arith.constant dense<0.000000e+00> : vector<4x8x16xf32>
    %87 = tpu.matmul %86, %73, %cst_32 {dimension_numbers = #tpu.dot_dimension_numbers<[2], [1], [1], [2], [0, 0, 0, 1, 1, 2], [0], [0]>} : vector<4x8x8xf32>, vector<4x8x16xf32>, vector<4x8x16xf32> -> vector<4x8x16xf32>
    "tpu.trace_stop"() : () -> ()
    %88 = vector.extract_strided_slice %87 {offsets = [0, 0, 0], sizes = [2, 8, 16], strides = [1, 1, 1]} : vector<4x8x16xf32> to vector<2x8x16xf32>
    %89 = vector.shape_cast %88 : vector<2x8x16xf32> to vector<16x16xf32>
    %90 = vector.extract_strided_slice %87 {offsets = [2, 0, 0], sizes = [2, 8, 16], strides = [1, 1, 1]} : vector<4x8x16xf32> to vector<2x8x16xf32>
    %91 = vector.shape_cast %90 : vector<2x8x16xf32> to vector<16x16xf32>
    %92 = tpu.concatenate %89, %91 in 1 : vector<16x16xf32>, vector<16x16xf32> -> vector<16x32xf32>
    %c9 = arith.constant 9 : index
    %c0_33 = arith.constant 0 : index
    %93 = vector.load %arg9[%c9, %c0_33] : memref<24x128xf32, #tpu.memory_space<vmem>>, vector<1x32xf32>
    %cst_34 = arith.constant dense<0.000000e+00> : vector<16x32xf32>
    %94 = tpu.matmul %92, %24, %cst_34 {dimension_numbers = #tpu.dot_dimension_numbers<[1], [0], [0], [1], [0, 0, 1, 1], [], []>} : vector<16x32xf32>, vector<32x32xf32>, vector<16x32xf32> -> vector<16x32xf32>
    %95 = arith.addf %6, %94 : vector<16x32xf32>
    %96 = vector.broadcast %93 : vector<1x32xf32> to vector<16x32xf32>
    %97 = arith.addf %95, %96 : vector<16x32xf32>
    %c12 = arith.constant 12 : index
    %c0_35 = arith.constant 0 : index
    %98 = vector.load %arg9[%c12, %c0_35] : memref<24x128xf32, #tpu.memory_space<vmem>>, vector<1x32xf32>
    %c13 = arith.constant 13 : index
    %c0_36 = arith.constant 0 : index
    %99 = vector.load %arg9[%c13, %c0_36] : memref<24x128xf32, #tpu.memory_space<vmem>>, vector<1x32xf32>
    %cst_37 = arith.constant dense<0.000000e+00> : vector<16xf32>
    %100 = vector.multi_reduction <add>, %97, %cst_37 [1] : vector<16x32xf32> to vector<16xf32>
    %101 = vector.shape_cast %100 : vector<16xf32> to vector<16x1xf32>
    %cst_38 = arith.constant 3.200000e+01 : f32
    %102 = vector.broadcast %cst_38 : f32 to vector<16x1xf32>
    %103 = arith.divf %101, %102 : vector<16x1xf32>
    %104 = vector.broadcast %103 : vector<16x1xf32> to vector<16x32xf32>
    %105 = arith.subf %97, %104 : vector<16x32xf32>
    %106 = arith.mulf %105, %105 : vector<16x32xf32>
    %cst_39 = arith.constant dense<0.000000e+00> : vector<16xf32>
    %107 = vector.multi_reduction <add>, %106, %cst_39 [1] : vector<16x32xf32> to vector<16xf32>
    %108 = vector.shape_cast %107 : vector<16xf32> to vector<16x1xf32>
    %cst_40 = arith.constant 3.200000e+01 : f32
    %109 = vector.broadcast %cst_40 : f32 to vector<16x1xf32>
    %110 = arith.divf %108, %109 : vector<16x1xf32>
    %111 = vector.broadcast %103 : vector<16x1xf32> to vector<16x32xf32>
    %112 = arith.subf %97, %111 : vector<16x32xf32>
    %cst_41 = arith.constant 9.99999974E-6 : f32
    %113 = vector.broadcast %cst_41 : f32 to vector<16x1xf32>
    %114 = arith.addf %110, %113 : vector<16x1xf32>
    %115 = math.rsqrt %114 : vector<16x1xf32>
    %116 = vector.broadcast %115 : vector<16x1xf32> to vector<16x32xf32>
    %117 = arith.mulf %112, %116 : vector<16x32xf32>
    %118 = vector.broadcast %98 : vector<1x32xf32> to vector<16x32xf32>
    %119 = arith.mulf %117, %118 : vector<16x32xf32>
    %120 = vector.broadcast %99 : vector<1x32xf32> to vector<16x32xf32>
    %121 = arith.addf %119, %120 : vector<16x32xf32>
    %c14 = arith.constant 14 : index
    %c0_42 = arith.constant 0 : index
    %122 = vector.load %arg9[%c14, %c0_42] : memref<24x128xf32, #tpu.memory_space<vmem>>, vector<1x64xf32>
    %c15 = arith.constant 15 : index
    %c0_43 = arith.constant 0 : index
    %123 = vector.load %arg9[%c15, %c0_43] : memref<24x128xf32, #tpu.memory_space<vmem>>, vector<1x32xf32>
    %cst_44 = arith.constant dense<0.000000e+00> : vector<16x64xf32>
    %124 = tpu.matmul %121, %26, %cst_44 {dimension_numbers = #tpu.dot_dimension_numbers<[1], [0], [0], [1], [0, 0, 1, 1], [], []>} : vector<16x32xf32>, vector<32x64xf32>, vector<16x64xf32> -> vector<16x64xf32>
    %125 = vector.broadcast %122 : vector<1x64xf32> to vector<16x64xf32>
    %126 = arith.addf %124, %125 : vector<16x64xf32>
    %cst_45 = arith.constant -1.702000e+00 : f32
    %127 = vector.broadcast %cst_45 : f32 to vector<16x64xf32>
    %128 = arith.mulf %127, %126 : vector<16x64xf32>
    %129 = math.exp %128 : vector<16x64xf32>
    %cst_46 = arith.constant 1.000000e+00 : f32
    %130 = vector.broadcast %cst_46 : f32 to vector<16x64xf32>
    %131 = arith.addf %130, %129 : vector<16x64xf32>
    %cst_47 = arith.constant 1.000000e+00 : f32
    %132 = vector.broadcast %cst_47 : f32 to vector<16x64xf32>
    %133 = arith.divf %132, %131 : vector<16x64xf32>
    %134 = arith.mulf %126, %133 : vector<16x64xf32>
    %cst_48 = arith.constant dense<0.000000e+00> : vector<16x32xf32>
    %135 = tpu.matmul %134, %28, %cst_48 {dimension_numbers = #tpu.dot_dimension_numbers<[1], [0], [0], [1], [0, 0, 1, 1], [], []>} : vector<16x64xf32>, vector<64x32xf32>, vector<16x32xf32> -> vector<16x32xf32>
    %136 = vector.broadcast %123 : vector<1x32xf32> to vector<16x32xf32>
    %137 = arith.addf %135, %136 : vector<16x32xf32>
    %138 = arith.addf %97, %137 : vector<16x32xf32>
    %139 = vector.shape_cast %138 : vector<16x32xf32> to vector<2x8x32xf32>
    %c0_49 = arith.constant 0 : index
    %c0_50 = arith.constant 0 : index
    %c0_51 = arith.constant 0 : index
    %140 = vector.load %arg3[%c0_49, %c0_50, %c0_51] : memref<2x8x1xf32, #tpu.memory_space<vmem>>, vector<2x8x1xf32>
    %141 = vector.broadcast %140 : vector<2x8x1xf32> to vector<2x8x32xf32>
    %142 = arith.mulf %139, %141 : vector<2x8x32xf32>
    %cst_52 = arith.constant dense<0.000000e+00> : vector<2x32xf32>
    %143 = vector.multi_reduction <add>, %142, %cst_52 [1] : vector<2x8x32xf32> to vector<2x32xf32>
    %c16 = arith.constant 16 : index
    %c0_53 = arith.constant 0 : index
    %144 = vector.load %arg9[%c16, %c0_53] : memref<24x128xf32, #tpu.memory_space<vmem>>, vector<1x32xf32>
    %c17 = arith.constant 17 : index
    %c0_54 = arith.constant 0 : index
    %145 = vector.load %arg9[%c17, %c0_54] : memref<24x128xf32, #tpu.memory_space<vmem>>, vector<1x32xf32>
    %cst_55 = arith.constant dense<0.000000e+00> : vector<2xf32>
    %146 = vector.multi_reduction <add>, %143, %cst_55 [1] : vector<2x32xf32> to vector<2xf32>
    %147 = vector.shape_cast %146 : vector<2xf32> to vector<2x1xf32>
    %cst_56 = arith.constant 3.200000e+01 : f32
    %148 = vector.broadcast %cst_56 : f32 to vector<2x1xf32>
    %149 = arith.divf %147, %148 : vector<2x1xf32>
    %150 = vector.broadcast %149 : vector<2x1xf32> to vector<2x32xf32>
    %151 = arith.subf %143, %150 : vector<2x32xf32>
    %152 = arith.mulf %151, %151 : vector<2x32xf32>
    %cst_57 = arith.constant dense<0.000000e+00> : vector<2xf32>
    %153 = vector.multi_reduction <add>, %152, %cst_57 [1] : vector<2x32xf32> to vector<2xf32>
    %154 = vector.shape_cast %153 : vector<2xf32> to vector<2x1xf32>
    %cst_58 = arith.constant 3.200000e+01 : f32
    %155 = vector.broadcast %cst_58 : f32 to vector<2x1xf32>
    %156 = arith.divf %154, %155 : vector<2x1xf32>
    %157 = vector.broadcast %149 : vector<2x1xf32> to vector<2x32xf32>
    %158 = arith.subf %143, %157 : vector<2x32xf32>
    %cst_59 = arith.constant 9.99999974E-6 : f32
    %159 = vector.broadcast %cst_59 : f32 to vector<2x1xf32>
    %160 = arith.addf %156, %159 : vector<2x1xf32>
    %161 = math.rsqrt %160 : vector<2x1xf32>
    %162 = vector.broadcast %161 : vector<2x1xf32> to vector<2x32xf32>
    %163 = arith.mulf %158, %162 : vector<2x32xf32>
    %164 = vector.broadcast %144 : vector<1x32xf32> to vector<2x32xf32>
    %165 = arith.mulf %163, %164 : vector<2x32xf32>
    %166 = vector.broadcast %145 : vector<1x32xf32> to vector<2x32xf32>
    %167 = arith.addf %165, %166 : vector<2x32xf32>
    %c0_60 = arith.constant 0 : index
    %c0_61 = arith.constant 0 : index
    %168 = vector.load %arg10[%c0_60, %c0_61] : memref<32x16xf32, #tpu.memory_space<vmem>>, vector<32x16xf32>
    %cst_62 = arith.constant dense<0.000000e+00> : vector<2x16xf32>
    %169 = tpu.matmul %167, %168, %cst_62 {dimension_numbers = #tpu.dot_dimension_numbers<[1], [0], [0], [1], [0, 0, 1, 1], [], []>} : vector<2x32xf32>, vector<32x16xf32>, vector<2x16xf32> -> vector<2x16xf32>
    %c0_63 = arith.constant 0 : index
    %c0_64 = arith.constant 0 : index
    %170 = vector.load %arg4[%c0_63, %c0_64] : memref<16x192xf32, #tpu.memory_space<vmem>>, vector<16x192xf32>
    %c0_65 = arith.constant 0 : index
    %c0_66 = arith.constant 0 : index
    %171 = vector.load %arg11[%c0_65, %c0_66] : memref<192x32xf32, #tpu.memory_space<vmem>>, vector<192x32xf32>
    %cst_67 = arith.constant dense<0.000000e+00> : vector<16x32xf32>
    %172 = tpu.matmul %170, %171, %cst_67 {dimension_numbers = #tpu.dot_dimension_numbers<[1], [0], [0], [1], [0, 0, 1, 1], [], []>} : vector<16x192xf32>, vector<192x32xf32>, vector<16x32xf32> -> vector<16x32xf32>
    %c0_68 = arith.constant 0 : index
    %c0_69 = arith.constant 0 : index
    %173 = vector.load %arg16[%c0_68, %c0_69] : memref<24x128xf32, #tpu.memory_space<vmem>>, vector<8x32xf32>
    %174 = vector.shape_cast %172 : vector<16x32xf32> to vector<2x8x32xf32>
    %175 = vector.shape_cast %173 : vector<8x32xf32> to vector<1x8x32xf32>
    %176 = vector.broadcast %175 : vector<1x8x32xf32> to vector<2x8x32xf32>
    %177 = arith.addf %174, %176 : vector<2x8x32xf32>
    %178 = vector.shape_cast %177 : vector<2x8x32xf32> to vector<16x32xf32>
    %c8_70 = arith.constant 8 : index
    %c0_71 = arith.constant 0 : index
    %179 = vector.load %arg16[%c8_70, %c0_71] : memref<24x128xf32, #tpu.memory_space<vmem>>, vector<1x32xf32>
    %c9_72 = arith.constant 9 : index
    %c0_73 = arith.constant 0 : index
    %180 = vector.load %arg16[%c9_72, %c0_73] : memref<24x128xf32, #tpu.memory_space<vmem>>, vector<1x32xf32>
    %cst_74 = arith.constant dense<0.000000e+00> : vector<16xf32>
    %181 = vector.multi_reduction <add>, %178, %cst_74 [1] : vector<16x32xf32> to vector<16xf32>
    %182 = vector.shape_cast %181 : vector<16xf32> to vector<16x1xf32>
    %cst_75 = arith.constant 3.200000e+01 : f32
    %183 = vector.broadcast %cst_75 : f32 to vector<16x1xf32>
    %184 = arith.divf %182, %183 : vector<16x1xf32>
    %185 = vector.broadcast %184 : vector<16x1xf32> to vector<16x32xf32>
    %186 = arith.subf %178, %185 : vector<16x32xf32>
    %187 = arith.mulf %186, %186 : vector<16x32xf32>
    %cst_76 = arith.constant dense<0.000000e+00> : vector<16xf32>
    %188 = vector.multi_reduction <add>, %187, %cst_76 [1] : vector<16x32xf32> to vector<16xf32>
    %189 = vector.shape_cast %188 : vector<16xf32> to vector<16x1xf32>
    %cst_77 = arith.constant 3.200000e+01 : f32
    %190 = vector.broadcast %cst_77 : f32 to vector<16x1xf32>
    %191 = arith.divf %189, %190 : vector<16x1xf32>
    %192 = vector.broadcast %184 : vector<16x1xf32> to vector<16x32xf32>
    %193 = arith.subf %178, %192 : vector<16x32xf32>
    %cst_78 = arith.constant 9.99999974E-6 : f32
    %194 = vector.broadcast %cst_78 : f32 to vector<16x1xf32>
    %195 = arith.addf %191, %194 : vector<16x1xf32>
    %196 = math.rsqrt %195 : vector<16x1xf32>
    %197 = vector.broadcast %196 : vector<16x1xf32> to vector<16x32xf32>
    %198 = arith.mulf %193, %197 : vector<16x32xf32>
    %199 = vector.broadcast %179 : vector<1x32xf32> to vector<16x32xf32>
    %200 = arith.mulf %198, %199 : vector<16x32xf32>
    %201 = vector.broadcast %180 : vector<1x32xf32> to vector<16x32xf32>
    %202 = arith.addf %200, %201 : vector<16x32xf32>
    %203 = tpu.iota {dimensions = array<i32: 1>} : vector<8x8xi32>
    %c5_i32 = arith.constant 5 : i32
    %204 = vector.broadcast %c5_i32 : i32 to vector<8x8xi32>
    %205 = arith.cmpi slt, %203, %204 : vector<8x8xi32>
    %cst_79 = arith.constant 0.000000e+00 : f32
    %cst_80 = arith.constant -1.000000e+30 : f32
    %206 = vector.broadcast %cst_79 : f32 to vector<8x8xf32>
    %207 = vector.broadcast %cst_80 : f32 to vector<8x8xf32>
    %208 = arith.select %205, %206, %207 : vector<8x8xi1>, vector<8x8xf32>
    %209 = vector.shape_cast %208 : vector<8x8xf32> to vector<1x8x8xf32>
    %210 = vector.shape_cast %209 : vector<1x8x8xf32> to vector<1x8x8xf32>
    %211 = vector.broadcast %210 : vector<1x8x8xf32> to vector<2x8x8xf32>
    %c0_81 = arith.constant 0 : index
    %c0_82 = arith.constant 0 : index
    %c0_83 = arith.constant 0 : index
    %212 = vector.load %arg12[%c0_81, %c0_82, %c0_83] : memref<1x32x96xf32, #tpu.memory_space<vmem>>, vector<1x32x96xf32>
    %213 = vector.shape_cast %212 : vector<1x32x96xf32> to vector<32x96xf32>
    %c0_84 = arith.constant 0 : index
    %c0_85 = arith.constant 0 : index
    %c0_86 = arith.constant 0 : index
    %214 = vector.load %arg13[%c0_84, %c0_85, %c0_86] : memref<1x32x32xf32, #tpu.memory_space<vmem>>, vector<1x32x32xf32>
    %215 = vector.shape_cast %214 : vector<1x32x32xf32> to vector<32x32xf32>
    %c0_87 = arith.constant 0 : index
    %c0_88 = arith.constant 0 : index
    %c0_89 = arith.constant 0 : index
    %216 = vector.load %arg14[%c0_87, %c0_88, %c0_89] : memref<1x32x64xf32, #tpu.memory_space<vmem>>, vector<1x32x64xf32>
    %217 = vector.shape_cast %216 : vector<1x32x64xf32> to vector<32x64xf32>
    %c0_90 = arith.constant 0 : index
    %c0_91 = arith.constant 0 : index
    %c0_92 = arith.constant 0 : index
    %218 = vector.load %arg15[%c0_90, %c0_91, %c0_92] : memref<1x64x32xf32, #tpu.memory_space<vmem>>, vector<1x64x32xf32>
    %219 = vector.shape_cast %218 : vector<1x64x32xf32> to vector<64x32xf32>
    %c12_93 = arith.constant 12 : index
    %c0_94 = arith.constant 0 : index
    %220 = vector.load %arg16[%c12_93, %c0_94] : memref<24x128xf32, #tpu.memory_space<vmem>>, vector<1x32xf32>
    %c13_95 = arith.constant 13 : index
    %c0_96 = arith.constant 0 : index
    %221 = vector.load %arg16[%c13_95, %c0_96] : memref<24x128xf32, #tpu.memory_space<vmem>>, vector<1x32xf32>
    %cst_97 = arith.constant dense<0.000000e+00> : vector<16xf32>
    %222 = vector.multi_reduction <add>, %202, %cst_97 [1] : vector<16x32xf32> to vector<16xf32>
    %223 = vector.shape_cast %222 : vector<16xf32> to vector<16x1xf32>
    %cst_98 = arith.constant 3.200000e+01 : f32
    %224 = vector.broadcast %cst_98 : f32 to vector<16x1xf32>
    %225 = arith.divf %223, %224 : vector<16x1xf32>
    %226 = vector.broadcast %225 : vector<16x1xf32> to vector<16x32xf32>
    %227 = arith.subf %202, %226 : vector<16x32xf32>
    %228 = arith.mulf %227, %227 : vector<16x32xf32>
    %cst_99 = arith.constant dense<0.000000e+00> : vector<16xf32>
    %229 = vector.multi_reduction <add>, %228, %cst_99 [1] : vector<16x32xf32> to vector<16xf32>
    %230 = vector.shape_cast %229 : vector<16xf32> to vector<16x1xf32>
    %cst_100 = arith.constant 3.200000e+01 : f32
    %231 = vector.broadcast %cst_100 : f32 to vector<16x1xf32>
    %232 = arith.divf %230, %231 : vector<16x1xf32>
    %233 = vector.broadcast %225 : vector<16x1xf32> to vector<16x32xf32>
    %234 = arith.subf %202, %233 : vector<16x32xf32>
    %cst_101 = arith.constant 9.99999974E-6 : f32
    %235 = vector.broadcast %cst_101 : f32 to vector<16x1xf32>
    %236 = arith.addf %232, %235 : vector<16x1xf32>
    %237 = math.rsqrt %236 : vector<16x1xf32>
    %238 = vector.broadcast %237 : vector<16x1xf32> to vector<16x32xf32>
    %239 = arith.mulf %234, %238 : vector<16x32xf32>
    %240 = vector.broadcast %220 : vector<1x32xf32> to vector<16x32xf32>
    %241 = arith.mulf %239, %240 : vector<16x32xf32>
    %242 = vector.broadcast %221 : vector<1x32xf32> to vector<16x32xf32>
    %243 = arith.addf %241, %242 : vector<16x32xf32>
    %c10_102 = arith.constant 10 : index
    %c0_103 = arith.constant 0 : index
    %244 = vector.load %arg16[%c10_102, %c0_103] : memref<24x128xf32, #tpu.memory_space<vmem>>, vector<1x96xf32>
    %cst_104 = arith.constant dense<0.000000e+00> : vector<16x96xf32>
    %245 = tpu.matmul %243, %213, %cst_104 {dimension_numbers = #tpu.dot_dimension_numbers<[1], [0], [0], [1], [0, 0, 1, 1], [], []>} : vector<16x32xf32>, vector<32x96xf32>, vector<16x96xf32> -> vector<16x96xf32>
    %246 = vector.broadcast %244 : vector<1x96xf32> to vector<16x96xf32>
    %247 = arith.addf %245, %246 : vector<16x96xf32>
    %248 = vector.extract_strided_slice %247 {offsets = [0, 0], sizes = [16, 16], strides = [1, 1]} : vector<16x96xf32> to vector<16x16xf32>
    %249 = vector.shape_cast %248 : vector<16x16xf32> to vector<2x8x16xf32>
    %250 = vector.extract_strided_slice %247 {offsets = [0, 16], sizes = [16, 16], strides = [1, 1]} : vector<16x96xf32> to vector<16x16xf32>
    %251 = vector.shape_cast %250 : vector<16x16xf32> to vector<2x8x16xf32>
    %252 = tpu.concatenate %249, %251 in 0 : vector<2x8x16xf32>, vector<2x8x16xf32> -> vector<4x8x16xf32>
    %cst_105 = arith.constant 2.500000e-01 : f32
    %253 = vector.broadcast %cst_105 : f32 to vector<4x8x16xf32>
    %254 = arith.mulf %252, %253 : vector<4x8x16xf32>
    %255 = vector.extract_strided_slice %247 {offsets = [0, 32], sizes = [16, 16], strides = [1, 1]} : vector<16x96xf32> to vector<16x16xf32>
    %256 = vector.shape_cast %255 : vector<16x16xf32> to vector<2x8x16xf32>
    %257 = vector.extract_strided_slice %247 {offsets = [0, 48], sizes = [16, 16], strides = [1, 1]} : vector<16x96xf32> to vector<16x16xf32>
    %258 = vector.shape_cast %257 : vector<16x16xf32> to vector<2x8x16xf32>
    %259 = tpu.concatenate %256, %258 in 0 : vector<2x8x16xf32>, vector<2x8x16xf32> -> vector<4x8x16xf32>
    %260 = vector.extract_strided_slice %247 {offsets = [0, 64], sizes = [16, 16], strides = [1, 1]} : vector<16x96xf32> to vector<16x16xf32>
    %261 = vector.shape_cast %260 : vector<16x16xf32> to vector<2x8x16xf32>
    %262 = vector.extract_strided_slice %247 {offsets = [0, 80], sizes = [16, 16], strides = [1, 1]} : vector<16x96xf32> to vector<16x16xf32>
    %263 = vector.shape_cast %262 : vector<16x16xf32> to vector<2x8x16xf32>
    %264 = tpu.concatenate %261, %263 in 0 : vector<2x8x16xf32>, vector<2x8x16xf32> -> vector<4x8x16xf32>
    %265 = tpu.concatenate %211, %211 in 0 : vector<2x8x8xf32>, vector<2x8x8xf32> -> vector<4x8x8xf32>
    "tpu.trace_start"() <{level = 10 : i32, message = "nqd,nkd->nqk"}> : () -> ()
    %cst_106 = arith.constant dense<0.000000e+00> : vector<4x8x8xf32>
    %266 = tpu.matmul %254, %259, %cst_106 {dimension_numbers = #tpu.dot_dimension_numbers<[2], [2], [1], [1], [0, 0, 0, 1, 1, 1], [0], [0]>} : vector<4x8x16xf32>, vector<4x8x16xf32>, vector<4x8x8xf32> -> vector<4x8x8xf32>
    "tpu.trace_stop"() : () -> ()
    %267 = arith.addf %266, %265 : vector<4x8x8xf32>
    %cst_107 = arith.constant dense<0xFF800000> : vector<4x8xf32>
    %268 = vector.multi_reduction <maximumf>, %267, %cst_107 [2] : vector<4x8x8xf32> to vector<4x8xf32>
    %269 = vector.shape_cast %268 : vector<4x8xf32> to vector<4x8x1xf32>
    %270 = vector.broadcast %269 : vector<4x8x1xf32> to vector<4x8x8xf32>
    %271 = arith.subf %267, %270 : vector<4x8x8xf32>
    %272 = math.exp %271 : vector<4x8x8xf32>
    %cst_108 = arith.constant dense<0.000000e+00> : vector<4x8xf32>
    %273 = vector.multi_reduction <add>, %272, %cst_108 [2] : vector<4x8x8xf32> to vector<4x8xf32>
    %274 = vector.shape_cast %273 : vector<4x8xf32> to vector<4x8x1xf32>
    %275 = tpu.reciprocal %274 {approx = true} : vector<4x8x1xf32> -> vector<4x8x1xf32>
    %276 = vector.broadcast %275 : vector<4x8x1xf32> to vector<4x8x8xf32>
    %277 = arith.mulf %272, %276 : vector<4x8x8xf32>
    "tpu.trace_start"() <{level = 10 : i32, message = "nqk,nkd->nqd"}> : () -> ()
    %cst_109 = arith.constant dense<0.000000e+00> : vector<4x8x16xf32>
    %278 = tpu.matmul %277, %264, %cst_109 {dimension_numbers = #tpu.dot_dimension_numbers<[2], [1], [1], [2], [0, 0, 0, 1, 1, 2], [0], [0]>} : vector<4x8x8xf32>, vector<4x8x16xf32>, vector<4x8x16xf32> -> vector<4x8x16xf32>
    "tpu.trace_stop"() : () -> ()
    %279 = vector.extract_strided_slice %278 {offsets = [0, 0, 0], sizes = [2, 8, 16], strides = [1, 1, 1]} : vector<4x8x16xf32> to vector<2x8x16xf32>
    %280 = vector.shape_cast %279 : vector<2x8x16xf32> to vector<16x16xf32>
    %281 = vector.extract_strided_slice %278 {offsets = [2, 0, 0], sizes = [2, 8, 16], strides = [1, 1, 1]} : vector<4x8x16xf32> to vector<2x8x16xf32>
    %282 = vector.shape_cast %281 : vector<2x8x16xf32> to vector<16x16xf32>
    %283 = tpu.concatenate %280, %282 in 1 : vector<16x16xf32>, vector<16x16xf32> -> vector<16x32xf32>
    %c11_110 = arith.constant 11 : index
    %c0_111 = arith.constant 0 : index
    %284 = vector.load %arg16[%c11_110, %c0_111] : memref<24x128xf32, #tpu.memory_space<vmem>>, vector<1x32xf32>
    %cst_112 = arith.constant dense<0.000000e+00> : vector<16x32xf32>
    %285 = tpu.matmul %283, %215, %cst_112 {dimension_numbers = #tpu.dot_dimension_numbers<[1], [0], [0], [1], [0, 0, 1, 1], [], []>} : vector<16x32xf32>, vector<32x32xf32>, vector<16x32xf32> -> vector<16x32xf32>
    %286 = arith.addf %202, %285 : vector<16x32xf32>
    %287 = vector.broadcast %284 : vector<1x32xf32> to vector<16x32xf32>
    %288 = arith.addf %286, %287 : vector<16x32xf32>
    %c14_113 = arith.constant 14 : index
    %c0_114 = arith.constant 0 : index
    %289 = vector.load %arg16[%c14_113, %c0_114] : memref<24x128xf32, #tpu.memory_space<vmem>>, vector<1x32xf32>
    %c15_115 = arith.constant 15 : index
    %c0_116 = arith.constant 0 : index
    %290 = vector.load %arg16[%c15_115, %c0_116] : memref<24x128xf32, #tpu.memory_space<vmem>>, vector<1x32xf32>
    %cst_117 = arith.constant dense<0.000000e+00> : vector<16xf32>
    %291 = vector.multi_reduction <add>, %288, %cst_117 [1] : vector<16x32xf32> to vector<16xf32>
    %292 = vector.shape_cast %291 : vector<16xf32> to vector<16x1xf32>
    %cst_118 = arith.constant 3.200000e+01 : f32
    %293 = vector.broadcast %cst_118 : f32 to vector<16x1xf32>
    %294 = arith.divf %292, %293 : vector<16x1xf32>
    %295 = vector.broadcast %294 : vector<16x1xf32> to vector<16x32xf32>
    %296 = arith.subf %288, %295 : vector<16x32xf32>
    %297 = arith.mulf %296, %296 : vector<16x32xf32>
    %cst_119 = arith.constant dense<0.000000e+00> : vector<16xf32>
    %298 = vector.multi_reduction <add>, %297, %cst_119 [1] : vector<16x32xf32> to vector<16xf32>
    %299 = vector.shape_cast %298 : vector<16xf32> to vector<16x1xf32>
    %cst_120 = arith.constant 3.200000e+01 : f32
    %300 = vector.broadcast %cst_120 : f32 to vector<16x1xf32>
    %301 = arith.divf %299, %300 : vector<16x1xf32>
    %302 = vector.broadcast %294 : vector<16x1xf32> to vector<16x32xf32>
    %303 = arith.subf %288, %302 : vector<16x32xf32>
    %cst_121 = arith.constant 9.99999974E-6 : f32
    %304 = vector.broadcast %cst_121 : f32 to vector<16x1xf32>
    %305 = arith.addf %301, %304 : vector<16x1xf32>
    %306 = math.rsqrt %305 : vector<16x1xf32>
    %307 = vector.broadcast %306 : vector<16x1xf32> to vector<16x32xf32>
    %308 = arith.mulf %303, %307 : vector<16x32xf32>
    %309 = vector.broadcast %289 : vector<1x32xf32> to vector<16x32xf32>
    %310 = arith.mulf %308, %309 : vector<16x32xf32>
    %311 = vector.broadcast %290 : vector<1x32xf32> to vector<16x32xf32>
    %312 = arith.addf %310, %311 : vector<16x32xf32>
    %c16_122 = arith.constant 16 : index
    %c0_123 = arith.constant 0 : index
    %313 = vector.load %arg16[%c16_122, %c0_123] : memref<24x128xf32, #tpu.memory_space<vmem>>, vector<1x64xf32>
    %c17_124 = arith.constant 17 : index
    %c0_125 = arith.constant 0 : index
    %314 = vector.load %arg16[%c17_124, %c0_125] : memref<24x128xf32, #tpu.memory_space<vmem>>, vector<1x32xf32>
    %cst_126 = arith.constant dense<0.000000e+00> : vector<16x64xf32>
    %315 = tpu.matmul %312, %217, %cst_126 {dimension_numbers = #tpu.dot_dimension_numbers<[1], [0], [0], [1], [0, 0, 1, 1], [], []>} : vector<16x32xf32>, vector<32x64xf32>, vector<16x64xf32> -> vector<16x64xf32>
    %316 = vector.broadcast %313 : vector<1x64xf32> to vector<16x64xf32>
    %317 = arith.addf %315, %316 : vector<16x64xf32>
    %cst_127 = arith.constant -1.702000e+00 : f32
    %318 = vector.broadcast %cst_127 : f32 to vector<16x64xf32>
    %319 = arith.mulf %318, %317 : vector<16x64xf32>
    %320 = math.exp %319 : vector<16x64xf32>
    %cst_128 = arith.constant 1.000000e+00 : f32
    %321 = vector.broadcast %cst_128 : f32 to vector<16x64xf32>
    %322 = arith.addf %321, %320 : vector<16x64xf32>
    %cst_129 = arith.constant 1.000000e+00 : f32
    %323 = vector.broadcast %cst_129 : f32 to vector<16x64xf32>
    %324 = arith.divf %323, %322 : vector<16x64xf32>
    %325 = arith.mulf %317, %324 : vector<16x64xf32>
    %cst_130 = arith.constant dense<0.000000e+00> : vector<16x32xf32>
    %326 = tpu.matmul %325, %219, %cst_130 {dimension_numbers = #tpu.dot_dimension_numbers<[1], [0], [0], [1], [0, 0, 1, 1], [], []>} : vector<16x64xf32>, vector<64x32xf32>, vector<16x32xf32> -> vector<16x32xf32>
    %327 = vector.broadcast %314 : vector<1x32xf32> to vector<16x32xf32>
    %328 = arith.addf %326, %327 : vector<16x32xf32>
    %329 = arith.addf %288, %328 : vector<16x32xf32>
    %330 = vector.shape_cast %329 : vector<16x32xf32> to vector<2x8x32xf32>
    %331 = vector.extract_strided_slice %330 {offsets = [0, 0, 0], sizes = [2, 1, 32], strides = [1, 1, 1]} : vector<2x8x32xf32> to vector<2x1x32xf32>
    %332 = vector.shape_cast %331 : vector<2x1x32xf32> to vector<2x32xf32>
    %c18 = arith.constant 18 : index
    %c0_131 = arith.constant 0 : index
    %333 = vector.load %arg16[%c18, %c0_131] : memref<24x128xf32, #tpu.memory_space<vmem>>, vector<1x32xf32>
    %c19 = arith.constant 19 : index
    %c0_132 = arith.constant 0 : index
    %334 = vector.load %arg16[%c19, %c0_132] : memref<24x128xf32, #tpu.memory_space<vmem>>, vector<1x32xf32>
    %cst_133 = arith.constant dense<0.000000e+00> : vector<2xf32>
    %335 = vector.multi_reduction <add>, %332, %cst_133 [1] : vector<2x32xf32> to vector<2xf32>
    %336 = vector.shape_cast %335 : vector<2xf32> to vector<2x1xf32>
    %cst_134 = arith.constant 3.200000e+01 : f32
    %337 = vector.broadcast %cst_134 : f32 to vector<2x1xf32>
    %338 = arith.divf %336, %337 : vector<2x1xf32>
    %339 = vector.broadcast %338 : vector<2x1xf32> to vector<2x32xf32>
    %340 = arith.subf %332, %339 : vector<2x32xf32>
    %341 = arith.mulf %340, %340 : vector<2x32xf32>
    %cst_135 = arith.constant dense<0.000000e+00> : vector<2xf32>
    %342 = vector.multi_reduction <add>, %341, %cst_135 [1] : vector<2x32xf32> to vector<2xf32>
    %343 = vector.shape_cast %342 : vector<2xf32> to vector<2x1xf32>
    %cst_136 = arith.constant 3.200000e+01 : f32
    %344 = vector.broadcast %cst_136 : f32 to vector<2x1xf32>
    %345 = arith.divf %343, %344 : vector<2x1xf32>
    %346 = vector.broadcast %338 : vector<2x1xf32> to vector<2x32xf32>
    %347 = arith.subf %332, %346 : vector<2x32xf32>
    %cst_137 = arith.constant 9.99999974E-6 : f32
    %348 = vector.broadcast %cst_137 : f32 to vector<2x1xf32>
    %349 = arith.addf %345, %348 : vector<2x1xf32>
    %350 = math.rsqrt %349 : vector<2x1xf32>
    %351 = vector.broadcast %350 : vector<2x1xf32> to vector<2x32xf32>
    %352 = arith.mulf %347, %351 : vector<2x32xf32>
    %353 = vector.broadcast %333 : vector<1x32xf32> to vector<2x32xf32>
    %354 = arith.mulf %352, %353 : vector<2x32xf32>
    %355 = vector.broadcast %334 : vector<1x32xf32> to vector<2x32xf32>
    %356 = arith.addf %354, %355 : vector<2x32xf32>
    %c0_138 = arith.constant 0 : index
    %c0_139 = arith.constant 0 : index
    %357 = vector.load %arg17[%c0_138, %c0_139] : memref<32x16xf32, #tpu.memory_space<vmem>>, vector<32x16xf32>
    %cst_140 = arith.constant dense<0.000000e+00> : vector<2x16xf32>
    %358 = tpu.matmul %356, %357, %cst_140 {dimension_numbers = #tpu.dot_dimension_numbers<[1], [0], [0], [1], [0, 0, 1, 1], [], []>} : vector<2x32xf32>, vector<32x16xf32>, vector<2x16xf32> -> vector<2x16xf32>
    %c0_141 = arith.constant 0 : index
    %c0_142 = arith.constant 0 : index
    %359 = memref.load %arg0[%c0_141, %c0_142] : memref<1x1xf32, #tpu.memory_space<smem>>
    %360 = arith.mulf %169, %169 : vector<2x16xf32>
    %cst_143 = arith.constant dense<0.000000e+00> : vector<2xf32>
    %361 = vector.multi_reduction <add>, %360, %cst_143 [1] : vector<2x16xf32> to vector<2xf32>
    %362 = vector.shape_cast %361 : vector<2xf32> to vector<2x1xf32>
    %cst_144 = arith.constant 1.000000e-24 : f32
    %363 = vector.broadcast %cst_144 : f32 to vector<2x1xf32>
    %364 = arith.maximumf %362, %363 : vector<2x1xf32>
    %365 = math.rsqrt %364 : vector<2x1xf32>
    %366 = vector.broadcast %365 : vector<2x1xf32> to vector<2x16xf32>
    %367 = arith.mulf %169, %366 : vector<2x16xf32>
    %368 = arith.mulf %358, %358 : vector<2x16xf32>
    %cst_145 = arith.constant dense<0.000000e+00> : vector<2xf32>
    %369 = vector.multi_reduction <add>, %368, %cst_145 [1] : vector<2x16xf32> to vector<2xf32>
    %370 = vector.shape_cast %369 : vector<2xf32> to vector<2x1xf32>
    %cst_146 = arith.constant 1.000000e-24 : f32
    %371 = vector.broadcast %cst_146 : f32 to vector<2x1xf32>
    %372 = arith.maximumf %370, %371 : vector<2x1xf32>
    %373 = math.rsqrt %372 : vector<2x1xf32>
    %374 = vector.broadcast %373 : vector<2x1xf32> to vector<2x16xf32>
    %375 = arith.mulf %358, %374 : vector<2x16xf32>
    "tpu.trace_start"() <{level = 10 : i32, message = "td,id->ti"}> : () -> ()
    %cst_147 = arith.constant dense<0.000000e+00> : vector<2x2xf32>
    %376 = tpu.matmul %367, %375, %cst_147 {dimension_numbers = #tpu.dot_dimension_numbers<[1], [1], [0], [0], [0, 0, 1, 0], [], []>} : vector<2x16xf32>, vector<2x16xf32>, vector<2x2xf32> -> vector<2x2xf32>
    "tpu.trace_stop"() : () -> ()
    %377 = vector.broadcast %359 : f32 to vector<2x2xf32>
    %378 = arith.mulf %376, %377 : vector<2x2xf32>
    %c0_148 = arith.constant 0 : index
    %c0_149 = arith.constant 0 : index
    %379 = vector.load %arg19[%c0_148, %c0_149] : memref<2x2xf32, #tpu.memory_space<vmem>>, vector<2x2xf32>
    tpu.vector_store %arg19[%c0_148, %c0_149], %378 {strides = array<i32>} : memref<2x2xf32, #tpu.memory_space<vmem>>, vector<2x2xf32>,
    "tpu.trace_start"() <{level = 10 : i32, message = "id,td->it"}> : () -> ()
    %cst_150 = arith.constant dense<0.000000e+00> : vector<2x2xf32>
    %380 = tpu.matmul %375, %367, %cst_150 {dimension_numbers = #tpu.dot_dimension_numbers<[1], [1], [0], [0], [0, 0, 1, 0], [], []>} : vector<2x16xf32>, vector<2x16xf32>, vector<2x2xf32> -> vector<2x2xf32>
    "tpu.trace_stop"() : () -> ()
    %381 = vector.broadcast %359 : f32 to vector<2x2xf32>
    %382 = arith.mulf %380, %381 : vector<2x2xf32>
    %c0_151 = arith.constant 0 : index
    %c0_152 = arith.constant 0 : index
    %383 = vector.load %arg18[%c0_151, %c0_152] : memref<2x2xf32, #tpu.memory_space<vmem>>, vector<2x2xf32>
    tpu.vector_store %arg18[%c0_151, %c0_152], %382 {strides = array<i32>} : memref<2x2xf32, #tpu.memory_space<vmem>>, vector<2x2xf32>,
    return
  }
}

</mosaic_0001>

<llo_original>
// kernel: custom_clip_forward.1
$region0: #{custom_clip_forward.1}
  #allocation0 [shape = 'u32[]', space=smem, size = 0x4, offset = 0x4, fixed_abs, tag = 'smem constant byte address 0x4 - core index']
  #allocation1 [shape = 'u32[72,128]{1,0:T(1,128)}', space=vmem, size = 0x9000, scoped, tag = 'internal scratch']
  #allocation2 [shape = 'f32[1,1]{1,0:T(1,128)S(6)}', space=smem, size = 0x200, scoped, tag = 'scoped memory for custom_clip_forward.1']
  %s0 = inlined_call_operand.<no memory space> [shape: f32[1,1], index: 0, kind: input, shape index: {}]
  %s1 = inlined_call_operand.vmem [shape: f32[16,32], index: 1, kind: input, shape index: {}]
  %s2 = inlined_call_operand.vmem [shape: f32[2,8], index: 2, kind: input, shape index: {}]
  %s3 = inlined_call_operand.vmem [shape: f32[2,8,1], index: 3, kind: input, shape index: {}]
  %s4 = inlined_call_operand.vmem [shape: f32[16,192], index: 4, kind: input, shape index: {}]
  %s5 = inlined_call_operand.vmem [shape: f32[1,32,96], index: 5, kind: input, shape index: {}]
  %s6 = inlined_call_operand.vmem [shape: f32[1,32,32], index: 6, kind: input, shape index: {}]
  %s7 = inlined_call_operand.vmem [shape: f32[1,32,64], index: 7, kind: input, shape index: {}]
  %s8 = inlined_call_operand.vmem [shape: f32[1,64,32], index: 8, kind: input, shape index: {}]
  %s9 = inlined_call_operand.vmem [shape: f32[24,128], index: 9, kind: input, shape index: {}]
  %s10 = inlined_call_operand.vmem [shape: f32[32,16], index: 10, kind: input, shape index: {}]
  %s11 = inlined_call_operand.vmem [shape: f32[192,32], index: 11, kind: input, shape index: {}]
  %s12 = inlined_call_operand.vmem [shape: f32[1,32,96], index: 12, kind: input, shape index: {}]
  %s13 = inlined_call_operand.vmem [shape: f32[1,32,32], index: 13, kind: input, shape index: {}]
  %s14 = inlined_call_operand.vmem [shape: f32[1,32,64], index: 14, kind: input, shape index: {}]
  %s15 = inlined_call_operand.vmem [shape: f32[1,64,32], index: 15, kind: input, shape index: {}]
  %s16 = inlined_call_operand.vmem [shape: f32[24,128], index: 16, kind: input, shape index: {}]
  %s17 = inlined_call_operand.vmem [shape: f32[32,16], index: 17, kind: input, shape index: {}]
  %s18 = inlined_call_operand.hbm [shape: f32[2,2], index: 18, kind: output, shape index: {0}]
  %s19 = inlined_call_operand.hbm [shape: f32[2,2], index: 19, kind: output, shape index: {1}]
  %20 = xla_tuple %s18, %s19
  %s21 = sld [smem:[#allocation0]]
  $region90: #{custom_clip_forward.1} parent=0
    _
  %s23 = ssub.s32 1, %s21
  %s24 = scalar_select 0, %s23, %s21
  %25 = sst [smem:[#allocation2]] %s0
  $region1: #{custom_clip_forward.1} parent=0
    #allocation3 [shape = 'u8[1024]{0}', space=vmem, size = 0x400, scoped, tag = 'output window, operand 0, single buffered']
    #allocation4 [shape = 's32[1]{0}', space=sflag, size = 0x4, scoped, tag = 'scoped memory for custom_clip_forward.1']
    #allocation5 [shape = 'u8[1024]{0}', space=vmem, size = 0x400, scoped, tag = 'output window, operand 1, single buffered']
    #allocation6 [shape = 's32[1]{0}', space=sflag, size = 0x4, scoped, tag = 'scoped memory for custom_clip_forward.1']
    %26 = vsyncpa [#allocation4], 0
    %27 = vsyncpa [#allocation6], 0
    // Predicated region
    $region2: #{custom_clip_forward.1} parent=1 // pred_check
      _
    $region3: #{custom_clip_forward.1} parent=1 // pred_check_branch
      %29 = sbr.rel (0) target = $region5
    $region4: #{custom_clip_forward.1} parent=1 // pred_region
      _
    $region5: #{custom_clip_forward.1} parent=1 // pred_fallthru
      _
    // Predicated region
    $region6: #{custom_clip_forward.1} parent=1 // pred_check
      _
    $region7: #{custom_clip_forward.1} parent=1 // pred_check_branch
      %31 = sbr.rel (0) target = $region9
    $region8: #{custom_clip_forward.1} parent=1 // pred_region
      _
    $region9: #{custom_clip_forward.1} parent=1 // pred_fallthru
      _
    // Predicated region
    $region10: #{custom_clip_forward.1} parent=1 // pred_check
      _
    $region11: #{custom_clip_forward.1} parent=1 // pred_check_branch
      %33 = sbr.rel (0) target = $region13
    $region12: #{custom_clip_forward.1} parent=1 // pred_region
      _
    $region13: #{custom_clip_forward.1} parent=1 // pred_fallthru
      _
    // Predicated region
    $region14: #{custom_clip_forward.1} parent=1 // pred_check
      _
    $region15: #{custom_clip_forward.1} parent=1 // pred_check_branch
      %35 = sbr.rel (0) target = $region17
    $region16: #{custom_clip_forward.1} parent=1 // pred_region
      _
    $region17: #{custom_clip_forward.1} parent=1 // pred_fallthru
      _
    // Predicated region
    $region18: #{custom_clip_forward.1} parent=1 // pred_check
      _
    $region19: #{custom_clip_forward.1} parent=1 // pred_check_branch
      %37 = sbr.rel (0) target = $region21
    $region20: #{custom_clip_forward.1} parent=1 // pred_region
      _
    $region21: #{custom_clip_forward.1} parent=1 // pred_fallthru
      _
    // Predicated region
    $region22: #{custom_clip_forward.1} parent=1 // pred_check
      _
    $region23: #{custom_clip_forward.1} parent=1 // pred_check_branch
      %39 = sbr.rel (0) target = $region25
    $region24: #{custom_clip_forward.1} parent=1 // pred_region
      _
    $region25: #{custom_clip_forward.1} parent=1 // pred_fallthru
      _
    // Predicated region
    $region26: #{custom_clip_forward.1} parent=1 // pred_check
      _
    $region27: #{custom_clip_forward.1} parent=1 // pred_check_branch
      %41 = sbr.rel (0) target = $region29
    $region28: #{custom_clip_forward.1} parent=1 // pred_region
      _
    $region29: #{custom_clip_forward.1} parent=1 // pred_fallthru
      _
    // Predicated region
    $region30: #{custom_clip_forward.1} parent=1 // pred_check
      _
    $region31: #{custom_clip_forward.1} parent=1 // pred_check_branch
      %43 = sbr.rel (0) target = $region33
    $region32: #{custom_clip_forward.1} parent=1 // pred_region
      _
    $region33: #{custom_clip_forward.1} parent=1 // pred_fallthru
      _
    // Predicated region
    $region34: #{custom_clip_forward.1} parent=1 // pred_check
      _
    $region35: #{custom_clip_forward.1} parent=1 // pred_check_branch
      %45 = sbr.rel (0) target = $region37
    $region36: #{custom_clip_forward.1} parent=1 // pred_region
      _
    $region37: #{custom_clip_forward.1} parent=1 // pred_fallthru
      _
    // Predicated region
    $region38: #{custom_clip_forward.1} parent=1 // pred_check
      _
    $region39: #{custom_clip_forward.1} parent=1 // pred_check_branch
      %47 = sbr.rel (0) target = $region41
    $region40: #{custom_clip_forward.1} parent=1 // pred_region
      _
    $region41: #{custom_clip_forward.1} parent=1 // pred_fallthru
      _
    // Predicated region
    $region42: #{custom_clip_forward.1} parent=1 // pred_check
      _
    $region43: #{custom_clip_forward.1} parent=1 // pred_check_branch
      %49 = sbr.rel (0) target = $region45
    $region44: #{custom_clip_forward.1} parent=1 // pred_region
      _
    $region45: #{custom_clip_forward.1} parent=1 // pred_fallthru
      _
    // Predicated region
    $region46: #{custom_clip_forward.1} parent=1 // pred_check
      _
    $region47: #{custom_clip_forward.1} parent=1 // pred_check_branch
      %51 = sbr.rel (0) target = $region49
    $region48: #{custom_clip_forward.1} parent=1 // pred_region
      _
    $region49: #{custom_clip_forward.1} parent=1 // pred_fallthru
      _
    // Predicated region
    $region50: #{custom_clip_forward.1} parent=1 // pred_check
      _
    $region51: #{custom_clip_forward.1} parent=1 // pred_check_branch
      %53 = sbr.rel (0) target = $region53
    $region52: #{custom_clip_forward.1} parent=1 // pred_region
      _
    $region53: #{custom_clip_forward.1} parent=1 // pred_fallthru
      _
    // Predicated region
    $region54: #{custom_clip_forward.1} parent=1 // pred_check
      _
    $region55: #{custom_clip_forward.1} parent=1 // pred_check_branch
      %55 = sbr.rel (0) target = $region57
    $region56: #{custom_clip_forward.1} parent=1 // pred_region
      _
    $region57: #{custom_clip_forward.1} parent=1 // pred_fallthru
      _
    // Predicated region
    $region58: #{custom_clip_forward.1} parent=1 // pred_check
      _
    $region59: #{custom_clip_forward.1} parent=1 // pred_check_branch
      %57 = sbr.rel (0) target = $region61
    $region60: #{custom_clip_forward.1} parent=1 // pred_region
      _
    $region61: #{custom_clip_forward.1} parent=1 // pred_fallthru
      _
    // Predicated region
    $region62: #{custom_clip_forward.1} parent=1 // pred_check
      _
    $region63: #{custom_clip_forward.1} parent=1 // pred_check_branch
      %59 = sbr.rel (0) target = $region65
    $region64: #{custom_clip_forward.1} parent=1 // pred_region
      _
    $region65: #{custom_clip_forward.1} parent=1 // pred_fallthru
      _
    // Predicated region
    $region66: #{custom_clip_forward.1} parent=1 // pred_check
      _
    $region67: #{custom_clip_forward.1} parent=1 // pred_check_branch
      %61 = sbr.rel (0) target = $region69
    $region68: #{custom_clip_forward.1} parent=1 // pred_region
      _
    $region69: #{custom_clip_forward.1} parent=1 // pred_fallthru
      _
    // Predicated region
    $region70: #{custom_clip_forward.1} parent=1 // pred_check
      _
    $region71: #{custom_clip_forward.1} parent=1 // pred_check_branch
      %63 = sbr.rel (0) target = $region73
    $region72: #{custom_clip_forward.1} parent=1 // pred_region
      _
    $region73: #{custom_clip_forward.1} parent=1 // pred_fallthru
      _
    %v64 = vld [vmem:[%s9] sm:$0xff]
    %v65 = vld [vmem:[%s1] sm:$0xff]
    %v66 = vld [vmem:[%s1 + $0x8] sm:$0xff]
    %v67 = vadd.f32 %v65, %v64
    %v68 = vadd.f32 %v66, %v64
    %v69 = vlaneseq
    %v70 = vshrl.u32 %v69, 7
    %v71 = vlaneseq
    %v72 = vand.u32 %v71, 127
    %vm73 = vcmp.ge.s32.totalorder %v70, %v72
    %v74 = vld [vmem:[%s2] sm:$0x3]
    %vm75 = vcmp.gt.f32.partialorder %v74, 0.0
    %v76 = vsel %vm75, 1, 0
    %v77 = vrot.slane %v76, 1
    %vm78 = vcmp.ne.s32.totalorder %v77, 0
    %v79 = vsel %vm73, 1, 0
    %vm80 = vcmp.eq.s32.totalorder %v79, 1
    %v81 = vsel %vm78, 1, 0
    %v82 = vperm.slane %v76, 0
    %v83 = vperm.slane %v81, 0
    %vm84 = vcmp.eq.s32.totalorder %v82, 1
    %vm85 = vcmp.eq.s32.totalorder %v83, 1
    %vm86 = vmand %vm80, %vm84
    %vm87 = vmand %vm80, %vm85
    %v88 = vsel %vm86, 0.0, -1e+30
    %v89 = vsel %vm87, 0.0, -1e+30
    %v90 = vld [vmem:[%s5] sm:$0xff]
    %v91 = vld [vmem:[%s5 + $0x8] sm:$0xff]
    %v92 = vld [vmem:[%s5 + $0x10] sm:$0xff]
    %v93 = vld [vmem:[%s5 + $0x18] sm:$0xff]
    %v94 = vld [vmem:[%s6] sm:$0xff]
    %v95 = vld [vmem:[%s6 + $0x8] sm:$0xff]
    %v96 = vld [vmem:[%s6 + $0x10] sm:$0xff]
    %v97 = vld [vmem:[%s6 + $0x18] sm:$0xff]
    %v98 = vld [vmem:[%s7] sm:$0xff]
    %v99 = vld [vmem:[%s7 + $0x8] sm:$0xff]
    %v100 = vld [vmem:[%s7 + $0x10] sm:$0xff]
    %v101 = vld [vmem:[%s7 + $0x18] sm:$0xff]
    %v102 = vld [vmem:[%s8] sm:$0xff]
    %v103 = vld [vmem:[%s8 + $0x8] sm:$0xff]
    %v104 = vld [vmem:[%s8 + $0x10] sm:$0xff]
    %v105 = vld [vmem:[%s8 + $0x18] sm:$0xff]
    %v106 = vld [vmem:[%s8 + $0x20] sm:$0xff]
    %v107 = vld [vmem:[%s8 + $0x28] sm:$0xff]
    %v108 = vld [vmem:[%s8 + $0x30] sm:$0xff]
    %v109 = vld [vmem:[%s8 + $0x38] sm:$0xff]
    %v110 = vld [vmem:[%s9 + $0xa] sm:$0x1]
    %v111 = vld [vmem:[%s9 + $0xb] sm:$0x1]
    %vm112 = vcmask 261120
    %v113 = vsel %vm112, %v67, 0.0
    %114 = vadd.xlane.f32.xlu0 %v113
    %v115 = vpop.xlane.xlu0 %114
    %v116 = vsel %vm112, %v68, 0.0
    %117 = vadd.xlane.f32.xlu0 %v116
    %v118 = vpop.xlane.xlu0 %117
    %v119 = vrcp.pop 32.0
    %v120 = vmul.f32 32.0, %v119
    %v121 = vsub.f32 1.0, %v120
    %v122 = vmul.f32 %v119, %v121
    %v123 = vadd.f32 %v119, %v122
    %vm124 = vweird.f32 %v119
    %v125 = vsel %vm124, %v119, %v123
    %v126 = vmul.f32 %v115, %v125
    %v127 = vmul.f32 %v118, %v125
    %v128 = vsub.f32 %v67, %v126
    %v129 = vsub.f32 %v68, %v127
    %v130 = vmul.f32 %v128, %v128
    %v131 = vmul.f32 %v129, %v129
    %v132 = vsel %vm112, %v130, 0.0
    %133 = vadd.xlane.f32.xlu0 %v132
    %v134 = vpop.xlane.xlu0 %133
    %v135 = vsel %vm112, %v131, 0.0
    %136 = vadd.xlane.f32.xlu0 %v135
    %v137 = vpop.xlane.xlu0 %136
    %v138 = vmul.f32 %v134, %v125
    %v139 = vmul.f32 %v137, %v125
    %v140 = vadd.f32 %v138, 1e-05
    %v141 = vadd.f32 %v139, 1e-05
    %v142 = vrsqrt.pop %v140
    %v143 = vmul.f32 %v142, %v140
    %v144 = vmul.f32 %v143, %v142
    %v145 = vmul.f32 0.5, %v144
    %v146 = vsub.f32 1.5, %v145
    %v147 = vmul.f32 %v142, %v146
    %vm148 = vweird.f32 %v140
    %vm149 = vweird.f32 %v142
    %vm150 = vmor %vm148, %vm149
    %v151 = vsel %vm150, %v142, %v147
    %v152 = vrsqrt.pop %v141
    %v153 = vmul.f32 %v152, %v141
    %v154 = vmul.f32 %v153, %v152
    %v155 = vmul.f32 0.5, %v154
    %v156 = vsub.f32 1.5, %v155
    %v157 = vmul.f32 %v152, %v156
    %vm158 = vweird.f32 %v141
    %vm159 = vweird.f32 %v152
    %vm160 = vmor %vm158, %vm159
    %v161 = vsel %vm160, %v152, %v157
    %v162 = vmul.f32 %v128, %v151
    %v163 = vmul.f32 %v129, %v161
    %v164 = vperm.slane %v110, 0
    %v165 = vmul.f32 %v162, %v164
    %v166 = vmul.f32 %v163, %v164
    %v167 = vperm.slane %v111, 0
    %v168 = vadd.f32 %v165, %v167
    %v169 = vadd.f32 %v166, %v167
    %v170 = vld [vmem:[%s9 + $0x8] sm:$0x1]
    %v171 = vperm.slane %v170, 0
    %v173 = vsel %vm112, %v168, 0
    %v176 = vsel %vm112, %v169, 0
    %178 = vmatpush.msra.mxu0 0.0
    %179 = vmatpush.msra.mxu0 0.0
    %180 = vmatpush.msra.mxu0 0.0
    %181 = vmatpush.msra.mxu0 0.0
    %182 = vmatpush.msra.mxu0 0.0
    %183 = vmatpush.msra.mxu0 0.0
    %184 = vmatpush.msra.mxu0 0.0
    %185 = vmatpush.msra.mxu0 0.0
    %186 = vmatpush.msra.mxu0 0.0
    %187 = vmatpush.msra.mxu0 0.0
    %188 = vmatpush.msra.mxu0 0.0
    %189 = vmatpush.msra.mxu0 0.0
    %190 = vmatpush.msra.mxu0 %v93
    %191 = vmatpush.msra.mxu0 %v92
    %192 = vmatpush.msra.mxu0 %v91
    %193 = vmatpush.msra.mxu0 %v90
    %194 = vmatmul.f32.gmra.mxu0 %v173
    %v195 = vpop.f32.mrf.mxu0
    %v196 = vadd.f32 %v171, %v195
    %197 = vmatmul.f32.gmra.mxu0 %v176
    %v198 = vpop.f32.mrf.mxu0
    %v199 = vadd.f32 %v171, %v198
    %200 = vdwg.mxu0
    %203 = vrot.lane.b32.xlu0 %v196, 112
    %v204 = vpop.permute.xlu0 %203
    %205 = vrot.lane.b32.xlu0 %v199, 112
    %v206 = vpop.permute.xlu0 %205
    %v209 = vmul.f32 %v196, 0.25
    %v210 = vmul.f32 %v199, 0.25
    %v211 = vmul.f32 %v204, 0.25
    %v212 = vmul.f32 %v206, 0.25
    %213 = vrot.lane.b32.xlu0 %v196, 96
    %v214 = vpop.permute.xlu0 %213
    %vm215 = vcmask 130048
    %v217 = vsel %vm215, %v209, 0
    %v219 = vsel %vm215, %v214, 0
    %221 = vmatpush.xpose.msra.mxu0 0.0
    %222 = vmatpush.xpose.msra.mxu0 0.0
    %223 = vmatpush.xpose.msra.mxu0 0.0
    %224 = vmatpush.xpose.msra.mxu0 0.0
    %225 = vmatpush.xpose.msra.mxu0 0.0
    %226 = vmatpush.xpose.msra.mxu0 0.0
    %227 = vmatpush.xpose.msra.mxu0 0.0
    %228 = vmatpush.xpose.msra.mxu0 0.0
    %229 = vmatpush.xpose.msra.mxu0 0.0
    %230 = vmatpush.xpose.msra.mxu0 0.0
    %231 = vmatpush.xpose.msra.mxu0 0.0
    %232 = vmatpush.xpose.msra.mxu0 0.0
    %233 = vmatpush.xpose.msra.mxu0 0.0
    %234 = vmatpush.xpose.msra.mxu0 0.0
    %235 = vmatpush.xpose.msra.mxu0 0.0
    %236 = vmatpush.xpose.msra.mxu0 %v219
    %237 = vmatmul.f32.gmra.mxu0 %v217
    %v238 = vpop.f32.mrf.mxu0
    %v239 = vadd.f32 %v88, %v238
    %240 = vdwg.mxu0
    %241 = vrot.lane.b32.xlu0 %v199, 96
    %v242 = vpop.permute.xlu0 %241
    %v244 = vsel %vm215, %v210, 0
    %v246 = vsel %vm215, %v242, 0
    %248 = vmatpush.xpose.msra.mxu0 0.0
    %249 = vmatpush.xpose.msra.mxu0 0.0
    %250 = vmatpush.xpose.msra.mxu0 0.0
    %251 = vmatpush.xpose.msra.mxu0 0.0
    %252 = vmatpush.xpose.msra.mxu0 0.0
    %253 = vmatpush.xpose.msra.mxu0 0.0
    %254 = vmatpush.xpose.msra.mxu0 0.0
    %255 = vmatpush.xpose.msra.mxu0 0.0
    %256 = vmatpush.xpose.msra.mxu0 0.0
    %257 = vmatpush.xpose.msra.mxu0 0.0
    %258 = vmatpush.xpose.msra.mxu0 0.0
    %259 = vmatpush.xpose.msra.mxu0 0.0
    %260 = vmatpush.xpose.msra.mxu0 0.0
    %261 = vmatpush.xpose.msra.mxu0 0.0
    %262 = vmatpush.xpose.msra.mxu0 0.0
    %263 = vmatpush.xpose.msra.mxu0 %v246
    %264 = vmatmul.f32.gmra.mxu0 %v244
    %v265 = vpop.f32.mrf.mxu0
    %v266 = vadd.f32 %v89, %v265
    %267 = vdwg.mxu0
    %268 = vrot.lane.b32.xlu0 %v204, 96
    %v269 = vpop.permute.xlu0 %268
    %v271 = vsel %vm215, %v211, 0
    %v273 = vsel %vm215, %v269, 0
    %275 = vmatpush.xpose.msra.mxu0 0.0
    %276 = vmatpush.xpose.msra.mxu0 0.0
    %277 = vmatpush.xpose.msra.mxu0 0.0
    %278 = vmatpush.xpose.msra.mxu0 0.0
    %279 = vmatpush.xpose.msra.mxu0 0.0
    %280 = vmatpush.xpose.msra.mxu0 0.0
    %281 = vmatpush.xpose.msra.mxu0 0.0
    %282 = vmatpush.xpose.msra.mxu0 0.0
    %283 = vmatpush.xpose.msra.mxu0 0.0
    %284 = vmatpush.xpose.msra.mxu0 0.0
    %285 = vmatpush.xpose.msra.mxu0 0.0
    %286 = vmatpush.xpose.msra.mxu0 0.0
    %287 = vmatpush.xpose.msra.mxu0 0.0
    %288 = vmatpush.xpose.msra.mxu0 0.0
    %289 = vmatpush.xpose.msra.mxu0 0.0
    %290 = vmatpush.xpose.msra.mxu0 %v273
    %291 = vmatmul.f32.gmra.mxu0 %v271
    %v292 = vpop.f32.mrf.mxu0
    %v293 = vadd.f32 %v88, %v292
    %294 = vdwg.mxu0
    %295 = vrot.lane.b32.xlu0 %v206, 96
    %v296 = vpop.permute.xlu0 %295
    %v298 = vsel %vm215, %v212, 0
    %v300 = vsel %vm215, %v296, 0
    %302 = vmatpush.xpose.msra.mxu0 0.0
    %303 = vmatpush.xpose.msra.mxu0 0.0
    %304 = vmatpush.xpose.msra.mxu0 0.0
    %305 = vmatpush.xpose.msra.mxu0 0.0
    %306 = vmatpush.xpose.msra.mxu0 0.0
    %307 = vmatpush.xpose.msra.mxu0 0.0
    %308 = vmatpush.xpose.msra.mxu0 0.0
    %309 = vmatpush.xpose.msra.mxu0 0.0
    %310 = vmatpush.xpose.msra.mxu0 0.0
    %311 = vmatpush.xpose.msra.mxu0 0.0
    %312 = vmatpush.xpose.msra.mxu0 0.0
    %313 = vmatpush.xpose.msra.mxu0 0.0
    %314 = vmatpush.xpose.msra.mxu0 0.0
    %315 = vmatpush.xpose.msra.mxu0 0.0
    %316 = vmatpush.xpose.msra.mxu0 0.0
    %317 = vmatpush.xpose.msra.mxu0 %v300
    %318 = vmatmul.f32.gmra.mxu0 %v298
    %v319 = vpop.f32.mrf.mxu0
    %v320 = vadd.f32 %v89, %v319
    %321 = vdwg.mxu0
    %vm322 = vcmask 64512
    %v323 = vsel %vm322, %v239, -inf
    %324 = vmax.xlane.f32.xlu0 %v323
    %v325 = vpop.xlane.xlu0 %324
    %v326 = vsel %vm322, %v266, -inf
    %327 = vmax.xlane.f32.xlu0 %v326
    %v328 = vpop.xlane.xlu0 %327
    %v329 = vsel %vm322, %v293, -inf
    %330 = vmax.xlane.f32.xlu0 %v329
    %v331 = vpop.xlane.xlu0 %330
    %v332 = vsel %vm322, %v320, -inf
    %333 = vmax.xlane.f32.xlu0 %v332
    %v334 = vpop.xlane.xlu0 %333
    %v335 = vsub.f32 %v239, %v325
    %v336 = vsub.f32 %v266, %v328
    %v337 = vsub.f32 %v293, %v331
    %v338 = vsub.f32 %v320, %v334
    %v339 = vmul.f32 %v335, 1.442695
    %v340 = vpow.pop %v339
    %v341 = vmul.f32 %v336, 1.442695
    %v342 = vpow.pop %v341
    %v343 = vmul.f32 %v337, 1.442695
    %v344 = vpow.pop %v343
    %v345 = vmul.f32 %v338, 1.442695
    %v346 = vpow.pop %v345
    %v347 = vsel %vm322, %v340, 0.0
    %348 = vadd.xlane.f32.xlu0 %v347
    %v349 = vpop.xlane.xlu0 %348
    %v350 = vsel %vm322, %v342, 0.0
    %351 = vadd.xlane.f32.xlu0 %v350
    %v352 = vpop.xlane.xlu0 %351
    %v353 = vsel %vm322, %v344, 0.0
    %354 = vadd.xlane.f32.xlu0 %v353
    %v355 = vpop.xlane.xlu0 %354
    %v356 = vsel %vm322, %v346, 0.0
    %357 = vadd.xlane.f32.xlu0 %v356
    %v358 = vpop.xlane.xlu0 %357
    %v359 = vrcp.pop %v349
    %v360 = vrcp.pop %v352
    %v361 = vrcp.pop %v355
    %v362 = vrcp.pop %v358
    %v363 = vmul.f32 %v340, %v359
    %v364 = vmul.f32 %v342, %v360
    %v365 = vmul.f32 %v344, %v361
    %v366 = vmul.f32 %v346, %v362
    %367 = vrot.lane.b32.xlu0 %v196, 64
    %v368 = vpop.permute.xlu0 %367
    %v371 = vsel %vm322, %v363, 0
    %373 = vmatpush.msra.mxu0 0.0
    %374 = vmatpush.msra.mxu0 0.0
    %375 = vmatpush.msra.mxu0 0.0
    %376 = vmatpush.msra.mxu0 0.0
    %377 = vmatpush.msra.mxu0 0.0
    %378 = vmatpush.msra.mxu0 0.0
    %379 = vmatpush.msra.mxu0 0.0
    %380 = vmatpush.msra.mxu0 0.0
    %381 = vmatpush.msra.mxu0 0.0
    %382 = vmatpush.msra.mxu0 0.0
    %383 = vmatpush.msra.mxu0 0.0
    %384 = vmatpush.msra.mxu0 0.0
    %385 = vmatpush.msra.mxu0 0.0
    %386 = vmatpush.msra.mxu0 0.0
    %387 = vmatpush.msra.mxu0 0.0
    %388 = vmatpush.msra.mxu0 %v368
    %389 = vmatmul.f32.gmra.mxu0 %v371
    %v390 = vpop.f32.mrf.mxu0
    %v391 = vadd.f32 0.0, %v390
    %392 = vdwg.mxu0
    %393 = vrot.lane.b32.xlu0 %v199, 64
    %v394 = vpop.permute.xlu0 %393
    %v397 = vsel %vm322, %v364, 0
    %399 = vmatpush.msra.mxu0 0.0
    %400 = vmatpush.msra.mxu0 0.0
    %401 = vmatpush.msra.mxu0 0.0
    %402 = vmatpush.msra.mxu0 0.0
    %403 = vmatpush.msra.mxu0 0.0
    %404 = vmatpush.msra.mxu0 0.0
    %405 = vmatpush.msra.mxu0 0.0
    %406 = vmatpush.msra.mxu0 0.0
    %407 = vmatpush.msra.mxu0 0.0
    %408 = vmatpush.msra.mxu0 0.0
    %409 = vmatpush.msra.mxu0 0.0
    %410 = vmatpush.msra.mxu0 0.0
    %411 = vmatpush.msra.mxu0 0.0
    %412 = vmatpush.msra.mxu0 0.0
    %413 = vmatpush.msra.mxu0 0.0
    %414 = vmatpush.msra.mxu0 %v394
    %415 = vmatmul.f32.gmra.mxu0 %v397
    %v416 = vpop.f32.mrf.mxu0
    %v417 = vadd.f32 0.0, %v416
    %418 = vdwg.mxu0
    %419 = vrot.lane.b32.xlu0 %v204, 64
    %v420 = vpop.permute.xlu0 %419
    %v423 = vsel %vm322, %v365, 0
    %425 = vmatpush.msra.mxu0 0.0
    %426 = vmatpush.msra.mxu0 0.0
    %427 = vmatpush.msra.mxu0 0.0
    %428 = vmatpush.msra.mxu0 0.0
    %429 = vmatpush.msra.mxu0 0.0
    %430 = vmatpush.msra.mxu0 0.0
    %431 = vmatpush.msra.mxu0 0.0
    %432 = vmatpush.msra.mxu0 0.0
    %433 = vmatpush.msra.mxu0 0.0
    %434 = vmatpush.msra.mxu0 0.0
    %435 = vmatpush.msra.mxu0 0.0
    %436 = vmatpush.msra.mxu0 0.0
    %437 = vmatpush.msra.mxu0 0.0
    %438 = vmatpush.msra.mxu0 0.0
    %439 = vmatpush.msra.mxu0 0.0
    %440 = vmatpush.msra.mxu0 %v420
    %441 = vmatmul.f32.gmra.mxu0 %v423
    %v442 = vpop.f32.mrf.mxu0
    %v443 = vadd.f32 0.0, %v442
    %444 = vdwg.mxu0
    %445 = vrot.lane.b32.xlu0 %v206, 64
    %v446 = vpop.permute.xlu0 %445
    %v449 = vsel %vm322, %v366, 0
    %451 = vmatpush.msra.mxu0 0.0
    %452 = vmatpush.msra.mxu0 0.0
    %453 = vmatpush.msra.mxu0 0.0
    %454 = vmatpush.msra.mxu0 0.0
    %455 = vmatpush.msra.mxu0 0.0
    %456 = vmatpush.msra.mxu0 0.0
    %457 = vmatpush.msra.mxu0 0.0
    %458 = vmatpush.msra.mxu0 0.0
    %459 = vmatpush.msra.mxu0 0.0
    %460 = vmatpush.msra.mxu0 0.0
    %461 = vmatpush.msra.mxu0 0.0
    %462 = vmatpush.msra.mxu0 0.0
    %463 = vmatpush.msra.mxu0 0.0
    %464 = vmatpush.msra.mxu0 0.0
    %465 = vmatpush.msra.mxu0 0.0
    %466 = vmatpush.msra.mxu0 %v446
    %467 = vmatmul.f32.gmra.mxu0 %v449
    %v468 = vpop.f32.mrf.mxu0
    %v469 = vadd.f32 0.0, %v468
    %470 = vdwg.mxu0
    %473 = vrot.lane.b32.xlu0 %v443, 16
    %v474 = vpop.permute.xlu0 %473
    %475 = vrot.lane.b32.xlu0 %v469, 16
    %v476 = vpop.permute.xlu0 %475
    %v479 = vsel %vm215, %v391, %v474
    %v480 = vsel %vm215, %v417, %v476
    %v481 = vld [vmem:[%s9 + $0x9] sm:$0x1]
    %v483 = vsel %vm112, %v479, 0
    %v486 = vsel %vm112, %v480, 0
    %488 = vmatpush.msra.mxu0 0.0
    %489 = vmatpush.msra.mxu0 0.0
    %490 = vmatpush.msra.mxu0 0.0
    %491 = vmatpush.msra.mxu0 0.0
    %492 = vmatpush.msra.mxu0 0.0
    %493 = vmatpush.msra.mxu0 0.0
    %494 = vmatpush.msra.mxu0 0.0
    %495 = vmatpush.msra.mxu0 0.0
    %496 = vmatpush.msra.mxu0 0.0
    %497 = vmatpush.msra.mxu0 0.0
    %498 = vmatpush.msra.mxu0 0.0
    %499 = vmatpush.msra.mxu0 0.0
    %500 = vmatpush.msra.mxu0 %v97
    %501 = vmatpush.msra.mxu0 %v96
    %502 = vmatpush.msra.mxu0 %v95
    %503 = vmatpush.msra.mxu0 %v94
    %504 = vmatmul.f32.gmra.mxu0 %v483
    %v505 = vpop.f32.mrf.mxu0
    %v506 = vadd.f32 0.0, %v505
    %507 = vmatmul.f32.gmra.mxu0 %v486
    %v508 = vpop.f32.mrf.mxu0
    %v509 = vadd.f32 0.0, %v508
    %510 = vdwg.mxu0
    %v511 = vadd.f32 %v67, %v506
    %v512 = vadd.f32 %v68, %v509
    %v513 = vperm.slane %v481, 0
    %v514 = vadd.f32 %v511, %v513
    %v515 = vadd.f32 %v512, %v513
    %v516 = vld [vmem:[%s9 + $0xc] sm:$0x1]
    %v517 = vld [vmem:[%s9 + $0xd] sm:$0x1]
    %v518 = vsel %vm112, %v514, 0.0
    %519 = vadd.xlane.f32.xlu0 %v518
    %v520 = vpop.xlane.xlu0 %519
    %v521 = vsel %vm112, %v515, 0.0
    %522 = vadd.xlane.f32.xlu0 %v521
    %v523 = vpop.xlane.xlu0 %522
    %v524 = vmul.f32 %v520, %v125
    %v525 = vmul.f32 %v523, %v125
    %v526 = vsub.f32 %v514, %v524
    %v527 = vsub.f32 %v515, %v525
    %v528 = vmul.f32 %v526, %v526
    %v529 = vmul.f32 %v527, %v527
    %v530 = vsel %vm112, %v528, 0.0
    %531 = vadd.xlane.f32.xlu0 %v530
    %v532 = vpop.xlane.xlu0 %531
    %v533 = vsel %vm112, %v529, 0.0
    %534 = vadd.xlane.f32.xlu0 %v533
    %v535 = vpop.xlane.xlu0 %534
    %v536 = vmul.f32 %v532, %v125
    %v537 = vmul.f32 %v535, %v125
    %v538 = vadd.f32 %v536, 1e-05
    %v539 = vadd.f32 %v537, 1e-05
    %v540 = vrsqrt.pop %v538
    %v541 = vmul.f32 %v540, %v538
    %v542 = vmul.f32 %v541, %v540
    %v543 = vmul.f32 0.5, %v542
    %v544 = vsub.f32 1.5, %v543
    %v545 = vmul.f32 %v540, %v544
    %vm546 = vweird.f32 %v538
    %vm547 = vweird.f32 %v540
    %vm548 = vmor %vm546, %vm547
    %v549 = vsel %vm548, %v540, %v545
    %v550 = vrsqrt.pop %v539
    %v551 = vmul.f32 %v550, %v539
    %v552 = vmul.f32 %v551, %v550
    %v553 = vmul.f32 0.5, %v552
    %v554 = vsub.f32 1.5, %v553
    %v555 = vmul.f32 %v550, %v554
    %vm556 = vweird.f32 %v539
    %vm557 = vweird.f32 %v550
    %vm558 = vmor %vm556, %vm557
    %v559 = vsel %vm558, %v550, %v555
    %v560 = vmul.f32 %v526, %v549
    %v561 = vmul.f32 %v527, %v559
    %v562 = vperm.slane %v516, 0
    %v563 = vmul.f32 %v560, %v562
    %v564 = vmul.f32 %v561, %v562
    %v565 = vperm.slane %v517, 0
    %v566 = vadd.f32 %v563, %v565
    %v567 = vadd.f32 %v564, %v565
    %v568 = vld [vmem:[%s9 + $0xe] sm:$0x1]
    %v569 = vld [vmem:[%s9 + $0xf] sm:$0x1]
    %v570 = vperm.slane %v568, 0
    %v572 = vsel %vm112, %v566, 0
    %v575 = vsel %vm112, %v567, 0
    %577 = vmatpush.msra.mxu0 0.0
    %578 = vmatpush.msra.mxu0 0.0
    %579 = vmatpush.msra.mxu0 0.0
    %580 = vmatpush.msra.mxu0 0.0
    %581 = vmatpush.msra.mxu0 0.0
    %582 = vmatpush.msra.mxu0 0.0
    %583 = vmatpush.msra.mxu0 0.0
    %584 = vmatpush.msra.mxu0 0.0
    %585 = vmatpush.msra.mxu0 0.0
    %586 = vmatpush.msra.mxu0 0.0
    %587 = vmatpush.msra.mxu0 0.0
    %588 = vmatpush.msra.mxu0 0.0
    %589 = vmatpush.msra.mxu0 %v101
    %590 = vmatpush.msra.mxu0 %v100
    %591 = vmatpush.msra.mxu0 %v99
    %592 = vmatpush.msra.mxu0 %v98
    %593 = vmatmul.f32.gmra.mxu0 %v572
    %v594 = vpop.f32.mrf.mxu0
    %v595 = vadd.f32 %v570, %v594
    %596 = vmatmul.f32.gmra.mxu0 %v575
    %v597 = vpop.f32.mrf.mxu0
    %v598 = vadd.f32 %v570, %v597
    %599 = vdwg.mxu0
    %v600 = vmul.f32 %v595, -1.702
    %v601 = vmul.f32 %v598, -1.702
    %v602 = vmul.f32 %v600, 1.442695
    %v603 = vpow.pop %v602
    %v604 = vmul.f32 %v601, 1.442695
    %v605 = vpow.pop %v604
    %v606 = vadd.f32 %v603, 1.0
    %v607 = vadd.f32 %v605, 1.0
    %v608 = vrcp.pop %v606
    %v609 = vmul.f32 %v606, %v608
    %v610 = vsub.f32 1.0, %v609
    %v611 = vmul.f32 %v608, %v610
    %v612 = vadd.f32 %v608, %v611
    %vm613 = vweird.f32 %v606
    %vm614 = vweird.f32 %v608
    %vm615 = vmor %vm613, %vm614
    %v616 = vsel %vm615, %v608, %v612
    %v617 = vand.u32 2147483647, %v606
    %vm618 = vcmp.eq.f32.partialorder %v617, 8.507059e+37
    %v619 = vand.u32 %v606, 2147483648
    %v620 = vor.u32 1.1754944e-38, %v619
    %v621 = vsel %vm618, %v620, %v616
    %v622 = vmul.f32 1.0, %v621
    %v623 = vrcp.pop %v607
    %v624 = vmul.f32 %v607, %v623
    %v625 = vsub.f32 1.0, %v624
    %v626 = vmul.f32 %v623, %v625
    %v627 = vadd.f32 %v623, %v626
    %vm628 = vweird.f32 %v607
    %vm629 = vweird.f32 %v623
    %vm630 = vmor %vm628, %vm629
    %v631 = vsel %vm630, %v623, %v627
    %v632 = vand.u32 2147483647, %v607
    %vm633 = vcmp.eq.f32.partialorder %v632, 8.507059e+37
    %v634 = vand.u32 %v607, 2147483648
    %v635 = vor.u32 1.1754944e-38, %v634
    %v636 = vsel %vm633, %v635, %v631
    %v637 = vmul.f32 1.0, %v636
    %v638 = vmul.f32 %v595, %v622
    %v639 = vmul.f32 %v598, %v637
    %v640 = vperm.slane %v569, 0
    %vm641 = vcmask 523264
    %v643 = vsel %vm641, %v638, 0
    %v646 = vsel %vm641, %v639, 0
    %648 = vmatpush.msra.mxu0 0.0
    %649 = vmatpush.msra.mxu0 0.0
    %650 = vmatpush.msra.mxu0 0.0
    %651 = vmatpush.msra.mxu0 0.0
    %652 = vmatpush.msra.mxu0 0.0
    %653 = vmatpush.msra.mxu0 0.0
    %654 = vmatpush.msra.mxu0 0.0
    %655 = vmatpush.msra.mxu0 0.0
    %656 = vmatpush.msra.mxu0 %v109
    %657 = vmatpush.msra.mxu0 %v108
    %658 = vmatpush.msra.mxu0 %v107
    %659 = vmatpush.msra.mxu0 %v106
    %660 = vmatpush.msra.mxu0 %v105
    %661 = vmatpush.msra.mxu0 %v104
    %662 = vmatpush.msra.mxu0 %v103
    %663 = vmatpush.msra.mxu0 %v102
    %664 = vmatmul.f32.gmra.mxu0 %v643
    %v665 = vpop.f32.mrf.mxu0
    %v666 = vadd.f32 %v640, %v665
    %667 = vmatmul.f32.gmra.mxu0 %v646
    %v668 = vpop.f32.mrf.mxu0
    %v669 = vadd.f32 %v640, %v668
    %670 = vdwg.mxu0
    %v671 = vadd.f32 %v514, %v666
    %v672 = vadd.f32 %v515, %v669
    %v673 = vld [vmem:[%s3] sm:$0xff]
    %v674 = vld [vmem:[%s3 + $0x8] sm:$0xff]
    %676 = vset.pattern.permute.xlu0 0
    %677 = vperm.xlu0 %676, %v673
    %v678 = vpop.permute.xlu0 %677
    %681 = vset.pattern.permute.xlu0 0
    %682 = vperm.xlu0 %681, %v674
    %v683 = vpop.permute.xlu0 %682
    %v685 = vmul.f32 %v671, %v678
    %v686 = vmul.f32 %v672, %v683
    %v687 = vsel %vm112, %v685, 0.0
    %v688 = vrot.slane %v687, 4
    %v689 = vadd.f32 %v687, %v688
    %v690 = vrot.slane %v689, 2
    %v691 = vadd.f32 %v689, %v690
    %v692 = vrot.slane %v691, 1
    %v693 = vadd.f32 %v691, %v692
    %v694 = vsel %vm112, %v686, 0.0
    %v695 = vrot.slane %v694, 4
    %v696 = vadd.f32 %v694, %v695
    %v697 = vrot.slane %v696, 2
    %v698 = vadd.f32 %v696, %v697
    %v699 = vrot.slane %v698, 1
    %v700 = vadd.f32 %v698, %v699
    %v701 = vld [vmem:[%s9 + $0x10] sm:$0x1]
    %v702 = vld [vmem:[%s9 + $0x11] sm:$0x1]
    %vm705 = vcmask 1041409
    %v706 = vsel %vm705, %v700, %v693
    %vm708 = vcmask 254976
    %v709 = vsel %vm708, %v706, 0.0
    %710 = vadd.xlane.f32.xlu0 %v709
    %v711 = vpop.xlane.xlu0 %710
    %v712 = vmul.f32 %v711, %v125
    %v714 = vrot.slane %v712, 1
    %v717 = vsub.f32 %v693, %v712
    %v718 = vsub.f32 %v700, %v714
    %v719 = vmul.f32 %v717, %v717
    %v720 = vmul.f32 %v718, %v718
    %v723 = vrot.slane %v720, 7
    %v724 = vsel %vm705, %v723, %v719
    %v726 = vsel %vm708, %v724, 0.0
    %727 = vadd.xlane.f32.xlu0 %v726
    %v728 = vpop.xlane.xlu0 %727
    %v729 = vmul.f32 %v728, %v125
    %v730 = vadd.f32 %v729, 1e-05
    %v731 = vrsqrt.pop %v730
    %v732 = vmul.f32 %v731, %v730
    %v733 = vmul.f32 %v732, %v731
    %v734 = vmul.f32 0.5, %v733
    %v735 = vsub.f32 1.5, %v734
    %v736 = vmul.f32 %v731, %v735
    %vm737 = vweird.f32 %v730
    %vm738 = vweird.f32 %v731
    %vm739 = vmor %vm737, %vm738
    %v740 = vsel %vm739, %v731, %v736
    %v742 = vrot.slane %v740, 1
    %v745 = vmul.f32 %v717, %v740
    %v746 = vmul.f32 %v718, %v742
    %v747 = vperm.slane %v701, 0
    %v748 = vmul.f32 %v745, %v747
    %v749 = vmul.f32 %v746, %v747
    %v750 = vperm.slane %v702, 0
    %v751 = vadd.f32 %v748, %v750
    %v752 = vadd.f32 %v749, %v750
    %v753 = vld [vmem:[%s10] sm:$0xff]
    %v754 = vld [vmem:[%s10 + $0x8] sm:$0xff]
    %v755 = vld [vmem:[%s10 + $0x10] sm:$0xff]
    %v756 = vld [vmem:[%s10 + $0x18] sm:$0xff]
    %v759 = vrot.slane %v752, 7
    %v760 = vsel %vm705, %v759, %v751
    %v761 = vsel %vm112, %v760, 0
    %763 = vmatpush.msra.mxu0 0.0
    %764 = vmatpush.msra.mxu0 0.0
    %765 = vmatpush.msra.mxu0 0.0
    %766 = vmatpush.msra.mxu0 0.0
    %767 = vmatpush.msra.mxu0 0.0
    %768 = vmatpush.msra.mxu0 0.0
    %769 = vmatpush.msra.mxu0 0.0
    %770 = vmatpush.msra.mxu0 0.0
    %771 = vmatpush.msra.mxu0 0.0
    %772 = vmatpush.msra.mxu0 0.0
    %773 = vmatpush.msra.mxu0 0.0
    %774 = vmatpush.msra.mxu0 0.0
    %775 = vmatpush.msra.mxu0 %v756
    %776 = vmatpush.msra.mxu0 %v755
    %777 = vmatpush.msra.mxu0 %v754
    %778 = vmatpush.msra.mxu0 %v753
    %779 = vmatmul.f32.gmra.mxu0 %v761
    %v780 = vpop.f32.mrf.mxu0
    %v781 = vadd.f32 0.0, %v780
    %782 = vdwg.mxu0
    %v783 = vld [vmem:[%s4] sm:$0xff]
    %v784 = vld [vmem:[%s4 + $0x8] sm:$0xff]
    %v785 = vld [vmem:[%s4 + $0x10] sm:$0xff]
    %v786 = vld [vmem:[%s4 + $0x18] sm:$0xff]
    %v787 = vld [vmem:[%s11] sm:$0xff]
    %v788 = vld [vmem:[%s11 + $0x8] sm:$0xff]
    %v789 = vld [vmem:[%s11 + $0x10] sm:$0xff]
    %v790 = vld [vmem:[%s11 + $0x18] sm:$0xff]
    %v791 = vld [vmem:[%s11 + $0x20] sm:$0xff]
    %v792 = vld [vmem:[%s11 + $0x28] sm:$0xff]
    %v793 = vld [vmem:[%s11 + $0x30] sm:$0xff]
    %v794 = vld [vmem:[%s11 + $0x38] sm:$0xff]
    %v795 = vld [vmem:[%s11 + $0x40] sm:$0xff]
    %v796 = vld [vmem:[%s11 + $0x48] sm:$0xff]
    %v797 = vld [vmem:[%s11 + $0x50] sm:$0xff]
    %v798 = vld [vmem:[%s11 + $0x58] sm:$0xff]
    %v799 = vld [vmem:[%s11 + $0x60] sm:$0xff]
    %v800 = vld [vmem:[%s11 + $0x68] sm:$0xff]
    %v801 = vld [vmem:[%s11 + $0x70] sm:$0xff]
    %v802 = vld [vmem:[%s11 + $0x78] sm:$0xff]
    %v803 = vld [vmem:[%s11 + $0x80] sm:$0xff]
    %v804 = vld [vmem:[%s11 + $0x88] sm:$0xff]
    %v805 = vld [vmem:[%s11 + $0x90] sm:$0xff]
    %v806 = vld [vmem:[%s11 + $0x98] sm:$0xff]
    %v807 = vld [vmem:[%s11 + $0xa0] sm:$0xff]
    %v808 = vld [vmem:[%s11 + $0xa8] sm:$0xff]
    %v809 = vld [vmem:[%s11 + $0xb0] sm:$0xff]
    %v810 = vld [vmem:[%s11 + $0xb8] sm:$0xff]
    %v812 = vsel %vm641, %v784, 0
    %v815 = vsel %vm641, %v786, 0
    %817 = vmatpush.msra.mxu0 %v802
    %818 = vmatpush.msra.mxu0 %v801
    %819 = vmatpush.msra.mxu0 %v800
    %820 = vmatpush.msra.mxu0 %v799
    %821 = vmatpush.msra.mxu0 %v798
    %822 = vmatpush.msra.mxu0 %v797
    %823 = vmatpush.msra.mxu0 %v796
    %824 = vmatpush.msra.mxu0 %v795
    %825 = vmatpush.msra.mxu0 %v794
    %826 = vmatpush.msra.mxu0 %v793
    %827 = vmatpush.msra.mxu0 %v792
    %828 = vmatpush.msra.mxu0 %v791
    %829 = vmatpush.msra.mxu0 %v790
    %830 = vmatpush.msra.mxu0 %v789
    %831 = vmatpush.msra.mxu0 %v788
    %832 = vmatpush.msra.mxu0 %v787
    %833 = vmatmul.f32.gmra.mxu0 %v783
    %v834 = vpop.f32.mrf.mxu0
    %v835 = vadd.f32 0.0, %v834
    %836 = vmatmul.f32.gmra.mxu0 %v785
    %v837 = vpop.f32.mrf.mxu0
    %v838 = vadd.f32 0.0, %v837
    %839 = vdwg.mxu0
    %840 = vmatpush.msra.mxu0 0.0
    %841 = vmatpush.msra.mxu0 0.0
    %842 = vmatpush.msra.mxu0 0.0
    %843 = vmatpush.msra.mxu0 0.0
    %844 = vmatpush.msra.mxu0 0.0
    %845 = vmatpush.msra.mxu0 0.0
    %846 = vmatpush.msra.mxu0 0.0
    %847 = vmatpush.msra.mxu0 0.0
    %848 = vmatpush.msra.mxu0 %v810
    %849 = vmatpush.msra.mxu0 %v809
    %850 = vmatpush.msra.mxu0 %v808
    %851 = vmatpush.msra.mxu0 %v807
    %852 = vmatpush.msra.mxu0 %v806
    %853 = vmatpush.msra.mxu0 %v805
    %854 = vmatpush.msra.mxu0 %v804
    %855 = vmatpush.msra.mxu0 %v803
    %856 = vmatmul.f32.gmra.mxu0 %v812
    %v857 = vpop.f32.mrf.mxu0
    %v858 = vadd.f32 %v835, %v857
    %859 = vmatmul.f32.gmra.mxu0 %v815
    %v860 = vpop.f32.mrf.mxu0
    %v861 = vadd.f32 %v838, %v860
    %862 = vdwg.mxu0
    %v863 = vld [vmem:[%s16] sm:$0xff]
    %v864 = vadd.f32 %v858, %v863
    %v865 = vadd.f32 %v861, %v863
    %v866 = vld [vmem:[%s16 + $0x8] sm:$0x1]
    %v867 = vld [vmem:[%s16 + $0x9] sm:$0x1]
    %v868 = vsel %vm112, %v864, 0.0
    %869 = vadd.xlane.f32.xlu0 %v868
    %v870 = vpop.xlane.xlu0 %869
    %v871 = vsel %vm112, %v865, 0.0
    %872 = vadd.xlane.f32.xlu0 %v871
    %v873 = vpop.xlane.xlu0 %872
    %v874 = vmul.f32 %v870, %v125
    %v875 = vmul.f32 %v873, %v125
    %v876 = vsub.f32 %v864, %v874
    %v877 = vsub.f32 %v865, %v875
    %v878 = vmul.f32 %v876, %v876
    %v879 = vmul.f32 %v877, %v877
    %v880 = vsel %vm112, %v878, 0.0
    %881 = vadd.xlane.f32.xlu0 %v880
    %v882 = vpop.xlane.xlu0 %881
    %v883 = vsel %vm112, %v879, 0.0
    %884 = vadd.xlane.f32.xlu0 %v883
    %v885 = vpop.xlane.xlu0 %884
    %v886 = vmul.f32 %v882, %v125
    %v887 = vmul.f32 %v885, %v125
    %v888 = vadd.f32 %v886, 1e-05
    %v889 = vadd.f32 %v887, 1e-05
    %v890 = vrsqrt.pop %v888
    %v891 = vmul.f32 %v890, %v888
    %v892 = vmul.f32 %v891, %v890
    %v893 = vmul.f32 0.5, %v892
    %v894 = vsub.f32 1.5, %v893
    %v895 = vmul.f32 %v890, %v894
    %vm896 = vweird.f32 %v888
    %vm897 = vweird.f32 %v890
    %vm898 = vmor %vm896, %vm897
    %v899 = vsel %vm898, %v890, %v895
    %v900 = vrsqrt.pop %v889
    %v901 = vmul.f32 %v900, %v889
    %v902 = vmul.f32 %v901, %v900
    %v903 = vmul.f32 0.5, %v902
    %v904 = vsub.f32 1.5, %v903
    %v905 = vmul.f32 %v900, %v904
    %vm906 = vweird.f32 %v889
    %vm907 = vweird.f32 %v900
    %vm908 = vmor %vm906, %vm907
    %v909 = vsel %vm908, %v900, %v905
    %v910 = vmul.f32 %v876, %v899
    %v911 = vmul.f32 %v877, %v909
    %v912 = vperm.slane %v866, 0
    %v913 = vmul.f32 %v910, %v912
    %v914 = vmul.f32 %v911, %v912
    %v915 = vperm.slane %v867, 0
    %v916 = vadd.f32 %v913, %v915
    %v917 = vadd.f32 %v914, %v915
    %vm918 = vcmp.lt.s32.totalorder %v72, 5
    %v919 = vsel %vm918, 0.0, -1e+30
    %v920 = vld [vmem:[%s12] sm:$0xff]
    %v921 = vld [vmem:[%s12 + $0x8] sm:$0xff]
    %v922 = vld [vmem:[%s12 + $0x10] sm:$0xff]
    %v923 = vld [vmem:[%s12 + $0x18] sm:$0xff]
    %v924 = vld [vmem:[%s13] sm:$0xff]
    %v925 = vld [vmem:[%s13 + $0x8] sm:$0xff]
    %v926 = vld [vmem:[%s13 + $0x10] sm:$0xff]
    %v927 = vld [vmem:[%s13 + $0x18] sm:$0xff]
    %v928 = vld [vmem:[%s14] sm:$0xff]
    %v929 = vld [vmem:[%s14 + $0x8] sm:$0xff]
    %v930 = vld [vmem:[%s14 + $0x10] sm:$0xff]
    %v931 = vld [vmem:[%s14 + $0x18] sm:$0xff]
    %v932 = vld [vmem:[%s15] sm:$0xff]
    %v933 = vld [vmem:[%s15 + $0x8] sm:$0xff]
    %v934 = vld [vmem:[%s15 + $0x10] sm:$0xff]
    %v935 = vld [vmem:[%s15 + $0x18] sm:$0xff]
    %v936 = vld [vmem:[%s15 + $0x20] sm:$0xff]
    %v937 = vld [vmem:[%s15 + $0x28] sm:$0xff]
    %v938 = vld [vmem:[%s15 + $0x30] sm:$0xff]
    %v939 = vld [vmem:[%s15 + $0x38] sm:$0xff]
    %v940 = vld [vmem:[%s16 + $0xc] sm:$0x1]
    %v941 = vld [vmem:[%s16 + $0xd] sm:$0x1]
    %v942 = vsel %vm112, %v916, 0.0
    %943 = vadd.xlane.f32.xlu0 %v942
    %v944 = vpop.xlane.xlu0 %943
    %v945 = vsel %vm112, %v917, 0.0
    %946 = vadd.xlane.f32.xlu0 %v945
    %v947 = vpop.xlane.xlu0 %946
    %v948 = vmul.f32 %v944, %v125
    %v949 = vmul.f32 %v947, %v125
    %v950 = vsub.f32 %v916, %v948
    %v951 = vsub.f32 %v917, %v949
    %v952 = vmul.f32 %v950, %v950
    %v953 = vmul.f32 %v951, %v951
    %v954 = vsel %vm112, %v952, 0.0
    %955 = vadd.xlane.f32.xlu0 %v954
    %v956 = vpop.xlane.xlu0 %955
    %v957 = vsel %vm112, %v953, 0.0
    %958 = vadd.xlane.f32.xlu0 %v957
    %v959 = vpop.xlane.xlu0 %958
    %v960 = vmul.f32 %v956, %v125
    %v961 = vmul.f32 %v959, %v125
    %v962 = vadd.f32 %v960, 1e-05
    %v963 = vadd.f32 %v961, 1e-05
    %v964 = vrsqrt.pop %v962
    %v965 = vmul.f32 %v964, %v962
    %v966 = vmul.f32 %v965, %v964
    %v967 = vmul.f32 0.5, %v966
    %v968 = vsub.f32 1.5, %v967
    %v969 = vmul.f32 %v964, %v968
    %vm970 = vweird.f32 %v962
    %vm971 = vweird.f32 %v964
    %vm972 = vmor %vm970, %vm971
    %v973 = vsel %vm972, %v964, %v969
    %v974 = vrsqrt.pop %v963
    %v975 = vmul.f32 %v974, %v963
    %v976 = vmul.f32 %v975, %v974
    %v977 = vmul.f32 0.5, %v976
    %v978 = vsub.f32 1.5, %v977
    %v979 = vmul.f32 %v974, %v978
    %vm980 = vweird.f32 %v963
    %vm981 = vweird.f32 %v974
    %vm982 = vmor %vm980, %vm981
    %v983 = vsel %vm982, %v974, %v979
    %v984 = vmul.f32 %v950, %v973
    %v985 = vmul.f32 %v951, %v983
    %v986 = vperm.slane %v940, 0
    %v987 = vmul.f32 %v984, %v986
    %v988 = vmul.f32 %v985, %v986
    %v989 = vperm.slane %v941, 0
    %v990 = vadd.f32 %v987, %v989
    %v991 = vadd.f32 %v988, %v989
    %v992 = vld [vmem:[%s16 + $0xa] sm:$0x1]
    %v993 = vperm.slane %v992, 0
    %v995 = vsel %vm112, %v990, 0
    %v998 = vsel %vm112, %v991, 0
    %1000 = vmatpush.msra.mxu0 0.0
    %1001 = vmatpush.msra.mxu0 0.0
    %1002 = vmatpush.msra.mxu0 0.0
    %1003 = vmatpush.msra.mxu0 0.0
    %1004 = vmatpush.msra.mxu0 0.0
    %1005 = vmatpush.msra.mxu0 0.0
    %1006 = vmatpush.msra.mxu0 0.0
    %1007 = vmatpush.msra.mxu0 0.0
    %1008 = vmatpush.msra.mxu0 0.0
    %1009 = vmatpush.msra.mxu0 0.0
    %1010 = vmatpush.msra.mxu0 0.0
    %1011 = vmatpush.msra.mxu0 0.0
    %1012 = vmatpush.msra.mxu0 %v923
    %1013 = vmatpush.msra.mxu0 %v922
    %1014 = vmatpush.msra.mxu0 %v921
    %1015 = vmatpush.msra.mxu0 %v920
    %1016 = vmatmul.f32.gmra.mxu0 %v995
    %v1017 = vpop.f32.mrf.mxu0
    %v1018 = vadd.f32 %v993, %v1017
    %1019 = vmatmul.f32.gmra.mxu0 %v998
    %v1020 = vpop.f32.mrf.mxu0
    %v1021 = vadd.f32 %v993, %v1020
    %1022 = vdwg.mxu0
    %1025 = vrot.lane.b32.xlu0 %v1018, 112
    %v1026 = vpop.permute.xlu0 %1025
    %1027 = vrot.lane.b32.xlu0 %v1021, 112
    %v1028 = vpop.permute.xlu0 %1027
    %v1031 = vmul.f32 %v1018, 0.25
    %v1032 = vmul.f32 %v1021, 0.25
    %v1033 = vmul.f32 %v1026, 0.25
    %v1034 = vmul.f32 %v1028, 0.25
    %1035 = vrot.lane.b32.xlu0 %v1018, 96
    %v1036 = vpop.permute.xlu0 %1035
    %v1038 = vsel %vm215, %v1031, 0
    %v1040 = vsel %vm215, %v1036, 0
    %1042 = vmatpush.xpose.msra.mxu0 0.0
    %1043 = vmatpush.xpose.msra.mxu0 0.0
    %1044 = vmatpush.xpose.msra.mxu0 0.0
    %1045 = vmatpush.xpose.msra.mxu0 0.0
    %1046 = vmatpush.xpose.msra.mxu0 0.0
    %1047 = vmatpush.xpose.msra.mxu0 0.0
    %1048 = vmatpush.xpose.msra.mxu0 0.0
    %1049 = vmatpush.xpose.msra.mxu0 0.0
    %1050 = vmatpush.xpose.msra.mxu0 0.0
    %1051 = vmatpush.xpose.msra.mxu0 0.0
    %1052 = vmatpush.xpose.msra.mxu0 0.0
    %1053 = vmatpush.xpose.msra.mxu0 0.0
    %1054 = vmatpush.xpose.msra.mxu0 0.0
    %1055 = vmatpush.xpose.msra.mxu0 0.0
    %1056 = vmatpush.xpose.msra.mxu0 0.0
    %1057 = vmatpush.xpose.msra.mxu0 %v1040
    %1058 = vmatmul.f32.gmra.mxu0 %v1038
    %v1059 = vpop.f32.mrf.mxu0
    %v1060 = vadd.f32 %v919, %v1059
    %1061 = vdwg.mxu0
    %1062 = vrot.lane.b32.xlu0 %v1021, 96
    %v1063 = vpop.permute.xlu0 %1062
    %v1065 = vsel %vm215, %v1032, 0
    %v1067 = vsel %vm215, %v1063, 0
    %1069 = vmatpush.xpose.msra.mxu0 0.0
    %1070 = vmatpush.xpose.msra.mxu0 0.0
    %1071 = vmatpush.xpose.msra.mxu0 0.0
    %1072 = vmatpush.xpose.msra.mxu0 0.0
    %1073 = vmatpush.xpose.msra.mxu0 0.0
    %1074 = vmatpush.xpose.msra.mxu0 0.0
    %1075 = vmatpush.xpose.msra.mxu0 0.0
    %1076 = vmatpush.xpose.msra.mxu0 0.0
    %1077 = vmatpush.xpose.msra.mxu0 0.0
    %1078 = vmatpush.xpose.msra.mxu0 0.0
    %1079 = vmatpush.xpose.msra.mxu0 0.0
    %1080 = vmatpush.xpose.msra.mxu0 0.0
    %1081 = vmatpush.xpose.msra.mxu0 0.0
    %1082 = vmatpush.xpose.msra.mxu0 0.0
    %1083 = vmatpush.xpose.msra.mxu0 0.0
    %1084 = vmatpush.xpose.msra.mxu0 %v1067
    %1085 = vmatmul.f32.gmra.mxu0 %v1065
    %v1086 = vpop.f32.mrf.mxu0
    %v1087 = vadd.f32 %v919, %v1086
    %1088 = vdwg.mxu0
    %1089 = vrot.lane.b32.xlu0 %v1026, 96
    %v1090 = vpop.permute.xlu0 %1089
    %v1092 = vsel %vm215, %v1033, 0
    %v1094 = vsel %vm215, %v1090, 0
    %1096 = vmatpush.xpose.msra.mxu0 0.0
    %1097 = vmatpush.xpose.msra.mxu0 0.0
    %1098 = vmatpush.xpose.msra.mxu0 0.0
    %1099 = vmatpush.xpose.msra.mxu0 0.0
    %1100 = vmatpush.xpose.msra.mxu0 0.0
    %1101 = vmatpush.xpose.msra.mxu0 0.0
    %1102 = vmatpush.xpose.msra.mxu0 0.0
    %1103 = vmatpush.xpose.msra.mxu0 0.0
    %1104 = vmatpush.xpose.msra.mxu0 0.0
    %1105 = vmatpush.xpose.msra.mxu0 0.0
    %1106 = vmatpush.xpose.msra.mxu0 0.0
    %1107 = vmatpush.xpose.msra.mxu0 0.0
    %1108 = vmatpush.xpose.msra.mxu0 0.0
    %1109 = vmatpush.xpose.msra.mxu0 0.0
    %1110 = vmatpush.xpose.msra.mxu0 0.0
    %1111 = vmatpush.xpose.msra.mxu0 %v1094
    %1112 = vmatmul.f32.gmra.mxu0 %v1092
    %v1113 = vpop.f32.mrf.mxu0
    %v1114 = vadd.f32 %v919, %v1113
    %1115 = vdwg.mxu0
    %1116 = vrot.lane.b32.xlu0 %v1028, 96
    %v1117 = vpop.permute.xlu0 %1116
    %v1119 = vsel %vm215, %v1034, 0
    %v1121 = vsel %vm215, %v1117, 0
    %1123 = vmatpush.xpose.msra.mxu0 0.0
    %1124 = vmatpush.xpose.msra.mxu0 0.0
    %1125 = vmatpush.xpose.msra.mxu0 0.0
    %1126 = vmatpush.xpose.msra.mxu0 0.0
    %1127 = vmatpush.xpose.msra.mxu0 0.0
    %1128 = vmatpush.xpose.msra.mxu0 0.0
    %1129 = vmatpush.xpose.msra.mxu0 0.0
    %1130 = vmatpush.xpose.msra.mxu0 0.0
    %1131 = vmatpush.xpose.msra.mxu0 0.0
    %1132 = vmatpush.xpose.msra.mxu0 0.0
    %1133 = vmatpush.xpose.msra.mxu0 0.0
    %1134 = vmatpush.xpose.msra.mxu0 0.0
    %1135 = vmatpush.xpose.msra.mxu0 0.0
    %1136 = vmatpush.xpose.msra.mxu0 0.0
    %1137 = vmatpush.xpose.msra.mxu0 0.0
    %1138 = vmatpush.xpose.msra.mxu0 %v1121
    %1139 = vmatmul.f32.gmra.mxu0 %v1119
    %v1140 = vpop.f32.mrf.mxu0
    %v1141 = vadd.f32 %v919, %v1140
    %1142 = vdwg.mxu0
    %v1143 = vsel %vm322, %v1060, -inf
    %1144 = vmax.xlane.f32.xlu0 %v1143
    %v1145 = vpop.xlane.xlu0 %1144
    %v1146 = vsel %vm322, %v1087, -inf
    %1147 = vmax.xlane.f32.xlu0 %v1146
    %v1148 = vpop.xlane.xlu0 %1147
    %v1149 = vsel %vm322, %v1114, -inf
    %1150 = vmax.xlane.f32.xlu0 %v1149
    %v1151 = vpop.xlane.xlu0 %1150
    %v1152 = vsel %vm322, %v1141, -inf
    %1153 = vmax.xlane.f32.xlu0 %v1152
    %v1154 = vpop.xlane.xlu0 %1153
    %v1155 = vsub.f32 %v1060, %v1145
    %v1156 = vsub.f32 %v1087, %v1148
    %v1157 = vsub.f32 %v1114, %v1151
    %v1158 = vsub.f32 %v1141, %v1154
    %v1159 = vmul.f32 %v1155, 1.442695
    %v1160 = vpow.pop %v1159
    %v1161 = vmul.f32 %v1156, 1.442695
    %v1162 = vpow.pop %v1161
    %v1163 = vmul.f32 %v1157, 1.442695
    %v1164 = vpow.pop %v1163
    %v1165 = vmul.f32 %v1158, 1.442695
    %v1166 = vpow.pop %v1165
    %v1167 = vsel %vm322, %v1160, 0.0
    %1168 = vadd.xlane.f32.xlu0 %v1167
    %v1169 = vpop.xlane.xlu0 %1168
    %v1170 = vsel %vm322, %v1162, 0.0
    %1171 = vadd.xlane.f32.xlu0 %v1170
    %v1172 = vpop.xlane.xlu0 %1171
    %v1173 = vsel %vm322, %v1164, 0.0
    %1174 = vadd.xlane.f32.xlu0 %v1173
    %v1175 = vpop.xlane.xlu0 %1174
    %v1176 = vsel %vm322, %v1166, 0.0
    %1177 = vadd.xlane.f32.xlu0 %v1176
    %v1178 = vpop.xlane.xlu0 %1177
    %v1179 = vrcp.pop %v1169
    %v1180 = vrcp.pop %v1172
    %v1181 = vrcp.pop %v1175
    %v1182 = vrcp.pop %v1178
    %v1183 = vmul.f32 %v1160, %v1179
    %v1184 = vmul.f32 %v1162, %v1180
    %v1185 = vmul.f32 %v1164, %v1181
    %v1186 = vmul.f32 %v1166, %v1182
    %1187 = vrot.lane.b32.xlu0 %v1018, 64
    %v1188 = vpop.permute.xlu0 %1187
    %v1191 = vsel %vm322, %v1183, 0
    %1193 = vmatpush.msra.mxu0 0.0
    %1194 = vmatpush.msra.mxu0 0.0
    %1195 = vmatpush.msra.mxu0 0.0
    %1196 = vmatpush.msra.mxu0 0.0
    %1197 = vmatpush.msra.mxu0 0.0
    %1198 = vmatpush.msra.mxu0 0.0
    %1199 = vmatpush.msra.mxu0 0.0
    %1200 = vmatpush.msra.mxu0 0.0
    %1201 = vmatpush.msra.mxu0 0.0
    %1202 = vmatpush.msra.mxu0 0.0
    %1203 = vmatpush.msra.mxu0 0.0
    %1204 = vmatpush.msra.mxu0 0.0
    %1205 = vmatpush.msra.mxu0 0.0
    %1206 = vmatpush.msra.mxu0 0.0
    %1207 = vmatpush.msra.mxu0 0.0
    %1208 = vmatpush.msra.mxu0 %v1188
    %1209 = vmatmul.f32.gmra.mxu0 %v1191
    %v1210 = vpop.f32.mrf.mxu0
    %v1211 = vadd.f32 0.0, %v1210
    %1212 = vdwg.mxu0
    %1213 = vrot.lane.b32.xlu0 %v1021, 64
    %v1214 = vpop.permute.xlu0 %1213
    %v1217 = vsel %vm322, %v1184, 0
    %1219 = vmatpush.msra.mxu0 0.0
    %1220 = vmatpush.msra.mxu0 0.0
    %1221 = vmatpush.msra.mxu0 0.0
    %1222 = vmatpush.msra.mxu0 0.0
    %1223 = vmatpush.msra.mxu0 0.0
    %1224 = vmatpush.msra.mxu0 0.0
    %1225 = vmatpush.msra.mxu0 0.0
    %1226 = vmatpush.msra.mxu0 0.0
    %1227 = vmatpush.msra.mxu0 0.0
    %1228 = vmatpush.msra.mxu0 0.0
    %1229 = vmatpush.msra.mxu0 0.0
    %1230 = vmatpush.msra.mxu0 0.0
    %1231 = vmatpush.msra.mxu0 0.0
    %1232 = vmatpush.msra.mxu0 0.0
    %1233 = vmatpush.msra.mxu0 0.0
    %1234 = vmatpush.msra.mxu0 %v1214
    %1235 = vmatmul.f32.gmra.mxu0 %v1217
    %v1236 = vpop.f32.mrf.mxu0
    %v1237 = vadd.f32 0.0, %v1236
    %1238 = vdwg.mxu0
    %1239 = vrot.lane.b32.xlu0 %v1026, 64
    %v1240 = vpop.permute.xlu0 %1239
    %v1243 = vsel %vm322, %v1185, 0
    %1245 = vmatpush.msra.mxu0 0.0
    %1246 = vmatpush.msra.mxu0 0.0
    %1247 = vmatpush.msra.mxu0 0.0
    %1248 = vmatpush.msra.mxu0 0.0
    %1249 = vmatpush.msra.mxu0 0.0
    %1250 = vmatpush.msra.mxu0 0.0
    %1251 = vmatpush.msra.mxu0 0.0
    %1252 = vmatpush.msra.mxu0 0.0
    %1253 = vmatpush.msra.mxu0 0.0
    %1254 = vmatpush.msra.mxu0 0.0
    %1255 = vmatpush.msra.mxu0 0.0
    %1256 = vmatpush.msra.mxu0 0.0
    %1257 = vmatpush.msra.mxu0 0.0
    %1258 = vmatpush.msra.mxu0 0.0
    %1259 = vmatpush.msra.mxu0 0.0
    %1260 = vmatpush.msra.mxu0 %v1240
    %1261 = vmatmul.f32.gmra.mxu0 %v1243
    %v1262 = vpop.f32.mrf.mxu0
    %v1263 = vadd.f32 0.0, %v1262
    %1264 = vdwg.mxu0
    %1265 = vrot.lane.b32.xlu0 %v1028, 64
    %v1266 = vpop.permute.xlu0 %1265
    %v1269 = vsel %vm322, %v1186, 0
    %1271 = vmatpush.msra.mxu0 0.0
    %1272 = vmatpush.msra.mxu0 0.0
    %1273 = vmatpush.msra.mxu0 0.0
    %1274 = vmatpush.msra.mxu0 0.0
    %1275 = vmatpush.msra.mxu0 0.0
    %1276 = vmatpush.msra.mxu0 0.0
    %1277 = vmatpush.msra.mxu0 0.0
    %1278 = vmatpush.msra.mxu0 0.0
    %1279 = vmatpush.msra.mxu0 0.0
    %1280 = vmatpush.msra.mxu0 0.0
    %1281 = vmatpush.msra.mxu0 0.0
    %1282 = vmatpush.msra.mxu0 0.0
    %1283 = vmatpush.msra.mxu0 0.0
    %1284 = vmatpush.msra.mxu0 0.0
    %1285 = vmatpush.msra.mxu0 0.0
    %1286 = vmatpush.msra.mxu0 %v1266
    %1287 = vmatmul.f32.gmra.mxu0 %v1269
    %v1288 = vpop.f32.mrf.mxu0
    %v1289 = vadd.f32 0.0, %v1288
    %1290 = vdwg.mxu0
    %1293 = vrot.lane.b32.xlu0 %v1263, 16
    %v1294 = vpop.permute.xlu0 %1293
    %1295 = vrot.lane.b32.xlu0 %v1289, 16
    %v1296 = vpop.permute.xlu0 %1295
    %v1299 = vsel %vm215, %v1211, %v1294
    %v1300 = vsel %vm215, %v1237, %v1296
    %v1301 = vld [vmem:[%s16 + $0xb] sm:$0x1]
    %v1303 = vsel %vm112, %v1299, 0
    %v1306 = vsel %vm112, %v1300, 0
    %1308 = vmatpush.msra.mxu0 0.0
    %1309 = vmatpush.msra.mxu0 0.0
    %1310 = vmatpush.msra.mxu0 0.0
    %1311 = vmatpush.msra.mxu0 0.0
    %1312 = vmatpush.msra.mxu0 0.0
    %1313 = vmatpush.msra.mxu0 0.0
    %1314 = vmatpush.msra.mxu0 0.0
    %1315 = vmatpush.msra.mxu0 0.0
    %1316 = vmatpush.msra.mxu0 0.0
    %1317 = vmatpush.msra.mxu0 0.0
    %1318 = vmatpush.msra.mxu0 0.0
    %1319 = vmatpush.msra.mxu0 0.0
    %1320 = vmatpush.msra.mxu0 %v927
    %1321 = vmatpush.msra.mxu0 %v926
    %1322 = vmatpush.msra.mxu0 %v925
    %1323 = vmatpush.msra.mxu0 %v924
    %1324 = vmatmul.f32.gmra.mxu0 %v1303
    %v1325 = vpop.f32.mrf.mxu0
    %v1326 = vadd.f32 0.0, %v1325
    %1327 = vmatmul.f32.gmra.mxu0 %v1306
    %v1328 = vpop.f32.mrf.mxu0
    %v1329 = vadd.f32 0.0, %v1328
    %1330 = vdwg.mxu0
    %v1331 = vadd.f32 %v916, %v1326
    %v1332 = vadd.f32 %v917, %v1329
    %v1333 = vperm.slane %v1301, 0
    %v1334 = vadd.f32 %v1331, %v1333
    %v1335 = vadd.f32 %v1332, %v1333
    %v1336 = vld [vmem:[%s16 + $0xe] sm:$0x1]
    %v1337 = vld [vmem:[%s16 + $0xf] sm:$0x1]
    %v1338 = vsel %vm112, %v1334, 0.0
    %1339 = vadd.xlane.f32.xlu0 %v1338
    %v1340 = vpop.xlane.xlu0 %1339
    %v1341 = vsel %vm112, %v1335, 0.0
    %1342 = vadd.xlane.f32.xlu0 %v1341
    %v1343 = vpop.xlane.xlu0 %1342
    %v1344 = vmul.f32 %v1340, %v125
    %v1345 = vmul.f32 %v1343, %v125
    %v1346 = vsub.f32 %v1334, %v1344
    %v1347 = vsub.f32 %v1335, %v1345
    %v1348 = vmul.f32 %v1346, %v1346
    %v1349 = vmul.f32 %v1347, %v1347
    %v1350 = vsel %vm112, %v1348, 0.0
    %1351 = vadd.xlane.f32.xlu0 %v1350
    %v1352 = vpop.xlane.xlu0 %1351
    %v1353 = vsel %vm112, %v1349, 0.0
    %1354 = vadd.xlane.f32.xlu0 %v1353
    %v1355 = vpop.xlane.xlu0 %1354
    %v1356 = vmul.f32 %v1352, %v125
    %v1357 = vmul.f32 %v1355, %v125
    %v1358 = vadd.f32 %v1356, 1e-05
    %v1359 = vadd.f32 %v1357, 1e-05
    %v1360 = vrsqrt.pop %v1358
    %v1361 = vmul.f32 %v1360, %v1358
    %v1362 = vmul.f32 %v1361, %v1360
    %v1363 = vmul.f32 0.5, %v1362
    %v1364 = vsub.f32 1.5, %v1363
    %v1365 = vmul.f32 %v1360, %v1364
    %vm1366 = vweird.f32 %v1358
    %vm1367 = vweird.f32 %v1360
    %vm1368 = vmor %vm1366, %vm1367
    %v1369 = vsel %vm1368, %v1360, %v1365
    %v1370 = vrsqrt.pop %v1359
    %v1371 = vmul.f32 %v1370, %v1359
    %v1372 = vmul.f32 %v1371, %v1370
    %v1373 = vmul.f32 0.5, %v1372
    %v1374 = vsub.f32 1.5, %v1373
    %v1375 = vmul.f32 %v1370, %v1374
    %vm1376 = vweird.f32 %v1359
    %vm1377 = vweird.f32 %v1370
    %vm1378 = vmor %vm1376, %vm1377
    %v1379 = vsel %vm1378, %v1370, %v1375
    %v1380 = vmul.f32 %v1346, %v1369
    %v1381 = vmul.f32 %v1347, %v1379
    %v1382 = vperm.slane %v1336, 0
    %v1383 = vmul.f32 %v1380, %v1382
    %v1384 = vmul.f32 %v1381, %v1382
    %v1385 = vperm.slane %v1337, 0
    %v1386 = vadd.f32 %v1383, %v1385
    %v1387 = vadd.f32 %v1384, %v1385
    %v1388 = vld [vmem:[%s16 + $0x10] sm:$0x1]
    %v1389 = vld [vmem:[%s16 + $0x11] sm:$0x1]
    %v1390 = vperm.slane %v1388, 0
    %v1392 = vsel %vm112, %v1386, 0
    %v1395 = vsel %vm112, %v1387, 0
    %1397 = vmatpush.msra.mxu0 0.0
    %1398 = vmatpush.msra.mxu0 0.0
    %1399 = vmatpush.msra.mxu0 0.0
    %1400 = vmatpush.msra.mxu0 0.0
    %1401 = vmatpush.msra.mxu0 0.0
    %1402 = vmatpush.msra.mxu0 0.0
    %1403 = vmatpush.msra.mxu0 0.0
    %1404 = vmatpush.msra.mxu0 0.0
    %1405 = vmatpush.msra.mxu0 0.0
    %1406 = vmatpush.msra.mxu0 0.0
    %1407 = vmatpush.msra.mxu0 0.0
    %1408 = vmatpush.msra.mxu0 0.0
    %1409 = vmatpush.msra.mxu0 %v931
    %1410 = vmatpush.msra.mxu0 %v930
    %1411 = vmatpush.msra.mxu0 %v929
    %1412 = vmatpush.msra.mxu0 %v928
    %1413 = vmatmul.f32.gmra.mxu0 %v1392
    %v1414 = vpop.f32.mrf.mxu0
    %v1415 = vadd.f32 %v1390, %v1414
    %1416 = vmatmul.f32.gmra.mxu0 %v1395
    %v1417 = vpop.f32.mrf.mxu0
    %v1418 = vadd.f32 %v1390, %v1417
    %1419 = vdwg.mxu0
    %v1420 = vmul.f32 %v1415, -1.702
    %v1421 = vmul.f32 %v1418, -1.702
    %v1422 = vmul.f32 %v1420, 1.442695
    %v1423 = vpow.pop %v1422
    %v1424 = vmul.f32 %v1421, 1.442695
    %v1425 = vpow.pop %v1424
    %v1426 = vadd.f32 %v1423, 1.0
    %v1427 = vadd.f32 %v1425, 1.0
    %v1428 = vrcp.pop %v1426
    %v1429 = vmul.f32 %v1426, %v1428
    %v1430 = vsub.f32 1.0, %v1429
    %v1431 = vmul.f32 %v1428, %v1430
    %v1432 = vadd.f32 %v1428, %v1431
    %vm1433 = vweird.f32 %v1426
    %vm1434 = vweird.f32 %v1428
    %vm1435 = vmor %vm1433, %vm1434
    %v1436 = vsel %vm1435, %v1428, %v1432
    %v1437 = vand.u32 2147483647, %v1426
    %vm1438 = vcmp.eq.f32.partialorder %v1437, 8.507059e+37
    %v1439 = vand.u32 %v1426, 2147483648
    %v1440 = vor.u32 1.1754944e-38, %v1439
    %v1441 = vsel %vm1438, %v1440, %v1436
    %v1442 = vmul.f32 1.0, %v1441
    %v1443 = vrcp.pop %v1427
    %v1444 = vmul.f32 %v1427, %v1443
    %v1445 = vsub.f32 1.0, %v1444
    %v1446 = vmul.f32 %v1443, %v1445
    %v1447 = vadd.f32 %v1443, %v1446
    %vm1448 = vweird.f32 %v1427
    %vm1449 = vweird.f32 %v1443
    %vm1450 = vmor %vm1448, %vm1449
    %v1451 = vsel %vm1450, %v1443, %v1447
    %v1452 = vand.u32 2147483647, %v1427
    %vm1453 = vcmp.eq.f32.partialorder %v1452, 8.507059e+37
    %v1454 = vand.u32 %v1427, 2147483648
    %v1455 = vor.u32 1.1754944e-38, %v1454
    %v1456 = vsel %vm1453, %v1455, %v1451
    %v1457 = vmul.f32 1.0, %v1456
    %v1458 = vmul.f32 %v1415, %v1442
    %v1459 = vmul.f32 %v1418, %v1457
    %v1460 = vperm.slane %v1389, 0
    %v1462 = vsel %vm641, %v1458, 0
    %v1465 = vsel %vm641, %v1459, 0
    %1467 = vmatpush.msra.mxu0 0.0
    %1468 = vmatpush.msra.mxu0 0.0
    %1469 = vmatpush.msra.mxu0 0.0
    %1470 = vmatpush.msra.mxu0 0.0
    %1471 = vmatpush.msra.mxu0 0.0
    %1472 = vmatpush.msra.mxu0 0.0
    %1473 = vmatpush.msra.mxu0 0.0
    %1474 = vmatpush.msra.mxu0 0.0
    %1475 = vmatpush.msra.mxu0 %v939
    %1476 = vmatpush.msra.mxu0 %v938
    %1477 = vmatpush.msra.mxu0 %v937
    %1478 = vmatpush.msra.mxu0 %v936
    %1479 = vmatpush.msra.mxu0 %v935
    %1480 = vmatpush.msra.mxu0 %v934
    %1481 = vmatpush.msra.mxu0 %v933
    %1482 = vmatpush.msra.mxu0 %v932
    %1483 = vmatmul.f32.gmra.mxu0 %v1462
    %v1484 = vpop.f32.mrf.mxu0
    %v1485 = vadd.f32 %v1460, %v1484
    %1486 = vmatmul.f32.gmra.mxu0 %v1465
    %v1487 = vpop.f32.mrf.mxu0
    %v1488 = vadd.f32 %v1460, %v1487
    %1489 = vdwg.mxu0
    %v1490 = vadd.f32 %v1334, %v1485
    %v1491 = vadd.f32 %v1335, %v1488
    %v1492 = vld [vmem:[%s16 + $0x12] sm:$0x1]
    %v1493 = vld [vmem:[%s16 + $0x13] sm:$0x1]
    %v1496 = vrot.slane %v1491, 7
    %v1497 = vsel %vm705, %v1496, %v1490
    %v1499 = vsel %vm708, %v1497, 0.0
    %1500 = vadd.xlane.f32.xlu0 %v1499
    %v1501 = vpop.xlane.xlu0 %1500
    %v1502 = vmul.f32 %v1501, %v125
    %v1504 = vrot.slane %v1502, 1
    %v1507 = vsub.f32 %v1490, %v1502
    %v1508 = vsub.f32 %v1491, %v1504
    %v1509 = vmul.f32 %v1507, %v1507
    %v1510 = vmul.f32 %v1508, %v1508
    %v1513 = vrot.slane %v1510, 7
    %v1514 = vsel %vm705, %v1513, %v1509
    %v1516 = vsel %vm708, %v1514, 0.0
    %1517 = vadd.xlane.f32.xlu0 %v1516
    %v1518 = vpop.xlane.xlu0 %1517
    %v1519 = vmul.f32 %v1518, %v125
    %v1520 = vadd.f32 %v1519, 1e-05
    %v1521 = vrsqrt.pop %v1520
    %v1522 = vmul.f32 %v1521, %v1520
    %v1523 = vmul.f32 %v1522, %v1521
    %v1524 = vmul.f32 0.5, %v1523
    %v1525 = vsub.f32 1.5, %v1524
    %v1526 = vmul.f32 %v1521, %v1525
    %vm1527 = vweird.f32 %v1520
    %vm1528 = vweird.f32 %v1521
    %vm1529 = vmor %vm1527, %vm1528
    %v1530 = vsel %vm1529, %v1521, %v1526
    %v1532 = vrot.slane %v1530, 1
    %v1535 = vmul.f32 %v1507, %v1530
    %v1536 = vmul.f32 %v1508, %v1532
    %v1537 = vperm.slane %v1492, 0
    %v1538 = vmul.f32 %v1535, %v1537
    %v1539 = vmul.f32 %v1536, %v1537
    %v1540 = vperm.slane %v1493, 0
    %v1541 = vadd.f32 %v1538, %v1540
    %v1542 = vadd.f32 %v1539, %v1540
    %v1543 = vld [vmem:[%s17] sm:$0xff]
    %v1544 = vld [vmem:[%s17 + $0x8] sm:$0xff]
    %v1545 = vld [vmem:[%s17 + $0x10] sm:$0xff]
    %v1546 = vld [vmem:[%s17 + $0x18] sm:$0xff]
    %v1549 = vrot.slane %v1542, 7
    %v1550 = vsel %vm705, %v1549, %v1541
    %v1551 = vsel %vm112, %v1550, 0
    %1553 = vmatpush.msra.mxu0 0.0
    %1554 = vmatpush.msra.mxu0 0.0
    %1555 = vmatpush.msra.mxu0 0.0
    %1556 = vmatpush.msra.mxu0 0.0
    %1557 = vmatpush.msra.mxu0 0.0
    %1558 = vmatpush.msra.mxu0 0.0
    %1559 = vmatpush.msra.mxu0 0.0
    %1560 = vmatpush.msra.mxu0 0.0
    %1561 = vmatpush.msra.mxu0 0.0
    %1562 = vmatpush.msra.mxu0 0.0
    %1563 = vmatpush.msra.mxu0 0.0
    %1564 = vmatpush.msra.mxu0 0.0
    %1565 = vmatpush.msra.mxu0 %v1546
    %1566 = vmatpush.msra.mxu0 %v1545
    %1567 = vmatpush.msra.mxu0 %v1544
    %1568 = vmatpush.msra.mxu0 %v1543
    %1569 = vmatmul.f32.gmra.mxu0 %v1551
    %v1570 = vpop.f32.mrf.mxu0
    %v1571 = vadd.f32 0.0, %v1570
    %1572 = vdwg.mxu0
    %s1573 = sld [smem:[#allocation2]]
    %v1574 = vmul.f32 %v781, %v781
    %vm1575 = vcmask 123904
    %v1576 = vsel %vm1575, %v1574, 0.0
    %1577 = vadd.xlane.f32.xlu0 %v1576
    %v1578 = vpop.xlane.xlu0 %1577
    %v1579 = vmax.f32 %v1578, 1e-24
    %v1580 = vrsqrt.pop %v1579
    %v1581 = vmul.f32 %v1580, %v1579
    %v1582 = vmul.f32 %v1581, %v1580
    %v1583 = vmul.f32 0.5, %v1582
    %v1584 = vsub.f32 1.5, %v1583
    %v1585 = vmul.f32 %v1580, %v1584
    %vm1586 = vweird.f32 %v1579
    %vm1587 = vweird.f32 %v1580
    %vm1588 = vmor %vm1586, %vm1587
    %v1589 = vsel %vm1588, %v1580, %v1585
    %v1590 = vmul.f32 %v781, %v1589
    %v1591 = vmul.f32 %v1571, %v1571
    %v1592 = vsel %vm1575, %v1591, 0.0
    %1593 = vadd.xlane.f32.xlu0 %v1592
    %v1594 = vpop.xlane.xlu0 %1593
    %v1595 = vmax.f32 %v1594, 1e-24
    %v1596 = vrsqrt.pop %v1595
    %v1597 = vmul.f32 %v1596, %v1595
    %v1598 = vmul.f32 %v1597, %v1596
    %v1599 = vmul.f32 0.5, %v1598
    %v1600 = vsub.f32 1.5, %v1599
    %v1601 = vmul.f32 %v1596, %v1600
    %vm1602 = vweird.f32 %v1595
    %vm1603 = vweird.f32 %v1596
    %vm1604 = vmor %vm1602, %vm1603
    %v1605 = vsel %vm1604, %v1596, %v1601
    %v1606 = vmul.f32 %v1571, %v1605
    %v1608 = vsel %vm215, %v1590, 0
    %v1611 = vsel %vm215, %v1606, 0
    %1613 = vmatpush.xpose.msra.mxu0 0.0
    %1614 = vmatpush.xpose.msra.mxu0 0.0
    %1615 = vmatpush.xpose.msra.mxu0 0.0
    %1616 = vmatpush.xpose.msra.mxu0 0.0
    %1617 = vmatpush.xpose.msra.mxu0 0.0
    %1618 = vmatpush.xpose.msra.mxu0 0.0
    %1619 = vmatpush.xpose.msra.mxu0 0.0
    %1620 = vmatpush.xpose.msra.mxu0 0.0
    %1621 = vmatpush.xpose.msra.mxu0 0.0
    %1622 = vmatpush.xpose.msra.mxu0 0.0
    %1623 = vmatpush.xpose.msra.mxu0 0.0
    %1624 = vmatpush.xpose.msra.mxu0 0.0
    %1625 = vmatpush.xpose.msra.mxu0 0.0
    %1626 = vmatpush.xpose.msra.mxu0 0.0
    %1627 = vmatpush.xpose.msra.mxu0 0.0
    %1628 = vmatpush.xpose.msra.mxu0 %v1611
    %1629 = vmatmul.f32.gmra.mxu0 %v1608
    %v1630 = vpop.f32.mrf.mxu0
    %v1631 = vadd.f32 0.0, %v1630
    %1632 = vdwg.mxu0
    %v1633 = vstv %s1573
    %v1634 = vmul.f32 %v1631, %v1633
    %vm1635 = vcmask 9216
    %1636 = vst.msk [vmem:[#allocation5] sm:$0x3] %vm1635, %v1634
    %1637 = vmatpush.xpose.msra.mxu0 0.0
    %1638 = vmatpush.xpose.msra.mxu0 0.0
    %1639 = vmatpush.xpose.msra.mxu0 0.0
    %1640 = vmatpush.xpose.msra.mxu0 0.0
    %1641 = vmatpush.xpose.msra.mxu0 0.0
    %1642 = vmatpush.xpose.msra.mxu0 0.0
    %1643 = vmatpush.xpose.msra.mxu0 0.0
    %1644 = vmatpush.xpose.msra.mxu0 0.0
    %1645 = vmatpush.xpose.msra.mxu0 0.0
    %1646 = vmatpush.xpose.msra.mxu0 0.0
    %1647 = vmatpush.xpose.msra.mxu0 0.0
    %1648 = vmatpush.xpose.msra.mxu0 0.0
    %1649 = vmatpush.xpose.msra.mxu0 0.0
    %1650 = vmatpush.xpose.msra.mxu0 0.0
    %1651 = vmatpush.xpose.msra.mxu0 0.0
    %1652 = vmatpush.xpose.msra.mxu0 %v1608
    %1653 = vmatmul.f32.gmra.mxu0 %v1611
    %v1654 = vpop.f32.mrf.mxu0
    %v1655 = vadd.f32 0.0, %v1654
    %1656 = vdwg.mxu0
    %v1657 = vmul.f32 %v1655, %v1633
    %1658 = vst.msk [vmem:[#allocation3] sm:$0x3] %vm1635, %v1657
    // Predicated region
    $region74: #{custom_clip_forward.1} parent=1 // pred_check
      _
    $region75: #{custom_clip_forward.1} parent=1 // pred_check_branch
      %1660 = sbr.rel (0) target = $region77
    $region76: #{custom_clip_forward.1} parent=1 // pred_region
      %1662 = vsyncadd [#allocation4], 0
      %s1664 = sshll.u32 [#allocation3], 4
      %s1665 = int_to_ptr.vmem [resolvable:$true] %s1664
      %s1666 = sshll.u32 %s18, 4
      %s1667 = int_to_ptr.hbm [resolvable:$true] %s1666
      %1669 = dma.vmem_to_hbm [thread:$0]  %s1665, 32, %s1667, [#allocation4]
    $region77: #{custom_clip_forward.1} parent=1 // pred_fallthru
      _
    // Predicated region
    $region78: #{custom_clip_forward.1} parent=1 // pred_check
      _
    $region79: #{custom_clip_forward.1} parent=1 // pred_check_branch
      %1671 = sbr.rel (0) target = $region81
    $region80: #{custom_clip_forward.1} parent=1 // pred_region
      %1673 = vsyncadd [#allocation6], 0
      %s1675 = sshll.u32 [#allocation5], 4
      %s1676 = int_to_ptr.vmem [resolvable:$true] %s1675
      %s1677 = sshll.u32 %s19, 4
      %s1678 = int_to_ptr.hbm [resolvable:$true] %s1677
      %1680 = dma.vmem_to_hbm [thread:$0]  %s1676, 32, %s1678, [#allocation6]
    $region81: #{custom_clip_forward.1} parent=1 // pred_fallthru
      _
    // Predicated region
    $region82: #{custom_clip_forward.1} parent=1 // pred_check
      _
    $region83: #{custom_clip_forward.1} parent=1 // pred_check_branch
      %1682 = sbr.rel (0) target = $region85
    $region84: #{custom_clip_forward.1} parent=1 // pred_region
      %1684 = dma.done [#allocation4], 32
    $region85: #{custom_clip_forward.1} parent=1 // pred_fallthru
      _
    // Predicated region
    $region86: #{custom_clip_forward.1} parent=1 // pred_check
      _
    $region87: #{custom_clip_forward.1} parent=1 // pred_check_branch
      %1686 = sbr.rel (0) target = $region89
    $region88: #{custom_clip_forward.1} parent=1 // pred_region
      %1688 = dma.done [#allocation6], 32
    $region89: #{custom_clip_forward.1} parent=1 // pred_fallthru
      _
    %1689 = vsyncpa [#allocation4], 1
    %1690 = vsyncpa [#allocation6], 1

</llo_original>
